<compile_context>
chip_gen: v6e
topology: v6e:2x2x1
jax: 0.10.0
libtpu: 0.0.40
codegen_flags: <defaults>
</compile_context>

<pallas_src>
import jax
import jax.numpy as jnp
from jax import lax
from jax.experimental import pallas as pl
from jax.experimental.pallas import tpu as pltpu


def lstm_classifier_forward(x, params):
    """x: (T, B, input_size) float32 -> (B, classes) float32."""
    T, B, I = x.shape
    H = params["w_hh"].shape[1]
    C = params["fc2_w"].shape[0]
    F1 = params["fc1_w"].shape[0]            # 64

    B_pad = ((B + 7) // 8) * 8                # sublane-pad the batch
    F1_pad = 128                              # lane-pad fc1 width
    C_pad = 128                               # lane-pad classes (lane-dense out)

    # --- wrapper-side layout plumbing (all zero-padded) -------------------
    x_p = jnp.zeros((T * B_pad, I), jnp.float32)
    x_p = x_p.reshape(T, B_pad, I).at[:, :B, :].set(x).reshape(T * B_pad, I)

    wih_t = params["w_ih"].T                                   # (I, 4H)
    whh_t = params["w_hh"].T                                   # (H, 4H)
    bias = (params["b_ih"] + params["b_hh"])[None, :]          # (1, 4H)

    w1_t = jnp.zeros((H, F1_pad), jnp.float32).at[:, :F1].set(params["fc1_w"].T)
    b1 = jnp.zeros((1, F1_pad), jnp.float32).at[:, :F1].set(params["fc1_b"][None, :])
    w2_t = jnp.zeros((F1_pad, C_pad), jnp.float32).at[:F1, :C].set(params["fc2_w"].T)
    b2 = jnp.zeros((1, C_pad), jnp.float32).at[:, :C].set(params["fc2_b"][None, :])

    def kernel(x_ref, wih_ref, whh_ref, b_ref,
               w1_ref, b1_ref, w2_ref, b2_ref, out_ref):
        # Hoisted input projection + bias for ALL timesteps: one MXU push.
        gates_x = (jnp.dot(x_ref[...], wih_ref[...],
                           preferred_element_type=jnp.float32)
                   + b_ref[...])                               # (T*B_pad, 4H)

        h = jnp.zeros((B_pad, H), jnp.float32)
        c = jnp.zeros((B_pad, H), jnp.float32)

        # Fully unrolled recurrence (T static, small) — static sublane-aligned
        # slices into gates_x; per-step work is h@W_hh + EUP/VALU only.
        for t in range(T):
            gates = (gates_x[t * B_pad:(t + 1) * B_pad, :]
                     + jnp.dot(h, whh_ref[...],
                               preferred_element_type=jnp.float32))   # (B_pad, 4H)
            i_g = jax.nn.sigmoid(gates[:, 0 * H:1 * H])
            f_g = jax.nn.sigmoid(gates[:, 1 * H:2 * H])
            g_g = jnp.tanh(gates[:, 2 * H:3 * H])
            o_g = jax.nn.sigmoid(gates[:, 3 * H:4 * H])
            c = f_g * c + i_g * g_g
            h = o_g * jnp.tanh(c)

        # Classifier head (lane-dense, padded to 128).
        z1 = jnp.maximum(jnp.dot(h, w1_ref[...],
                                 preferred_element_type=jnp.float32)
                         + b1_ref[...], 0.0)
        # TODO(synk): F.dropout (training-mode p=0.5) between fc_1 and fc_2 is
        # omitted — deterministic inference semantics.
        z2 = jnp.maximum(jnp.dot(z1, w2_ref[...],
                                 preferred_element_type=jnp.float32)
                         + b2_ref[...], 0.0)
        out_ref[...] = z2.astype(out_ref.dtype)

    vmem = pl.BlockSpec(memory_space=pltpu.MemorySpace.VMEM)

    out_pad = pl.pallas_call(
        kernel,
        out_shape=jax.ShapeDtypeStruct((B_pad, C_pad), jnp.float32),
        in_specs=[vmem] * 8,
        out_specs=vmem,
    )(x_p, wih_t, whh_t, bias, w1_t, b1, w2_t, b2)

    return out_pad[:B, :C]


def _reference_forward(x, params):
    """Pure-JAX reference mirroring the PyTorch module (dropout as identity)."""
    H = params["w_hh"].shape[1]
    B = x.shape[1]

    def step(carry, x_t):
        h, c = carry
        gates = (x_t @ params["w_ih"].T + params["b_ih"]
                 + h @ params["w_hh"].T + params["b_hh"])
        i = jax.nn.sigmoid(gates[:, 0 * H:1 * H])
        f = jax.nn.sigmoid(gates[:, 1 * H:2 * H])
        g = jnp.tanh(gates[:, 2 * H:3 * H])
        o = jax.nn.sigmoid(gates[:, 3 * H:4 * H])
        c = f * c + i * g
        h = o * jnp.tanh(c)
        return (h, c), None

    h0 = jnp.zeros((B, H), jnp.float32)
    (h, _), _ = lax.scan(step, (h0, h0), x)
    z1 = jnp.maximum(h @ params["fc1_w"].T + params["fc1_b"], 0.0)
    z2 = jnp.maximum(z1 @ params["fc2_w"].T + params["fc2_b"], 0.0)
    return z2


def init_params(key, input_size=28, hidden_size=128, classes=10):
    ks = jax.random.split(key, 8)
    k_lstm = 1.0 / jnp.sqrt(hidden_size)
    k_fc1 = 1.0 / jnp.sqrt(hidden_size)
    k_fc2 = 1.0 / jnp.sqrt(64)
    u = lambda k, shape, b: jax.random.uniform(k, shape, jnp.float32, -b, b)
    return {
        "w_ih": u(ks[0], (4 * hidden_size, input_size), k_lstm),
        "w_hh": u(ks[1], (4 * hidden_size, hidden_size), k_lstm),
        "b_ih": u(ks[2], (4 * hidden_size,), k_lstm),
        "b_hh": u(ks[3], (4 * hidden_size,), k_lstm),
        "fc1_w": u(ks[4], (64, hidden_size), k_fc1),
        "fc1_b": u(ks[5], (64,), k_fc1),
        "fc2_w": u(ks[6], (classes, 64), k_fc2),
        "fc2_b": u(ks[7], (classes,), k_fc2),
    }


if __name__ == "__main__":
    seq_len, batch, input_size, hidden_size, classes = 8, 2, 28, 128, 10
    key = jax.random.PRNGKey(0)
    kx, kp = jax.random.split(key)
    x = jax.random.normal(kx, (seq_len, batch, input_size), jnp.float32)
    params = init_params(kp, input_size, hidden_size, classes)

    out = lstm_classifier_forward(x, params)
    out = jax.block_until_ready(out)

    ref = _reference_forward(x, params)
    assert out.shape == (batch, classes)
    assert jnp.allclose(out, ref, atol=1e-4, rtol=1e-4)
    print("KERNEL_OK")
</pallas_src>

<mosaic_0001>
module attributes {stable_mosaic.version = 11 : i64} {
  func.func @kernel(%arg0: memref<64x28xf32, #tpu.memory_space<vmem>>, %arg1: memref<28x512xf32, #tpu.memory_space<vmem>>, %arg2: memref<128x512xf32, #tpu.memory_space<vmem>>, %arg3: memref<1x512xf32, #tpu.memory_space<vmem>>, %arg4: memref<128x128xf32, #tpu.memory_space<vmem>>, %arg5: memref<1x128xf32, #tpu.memory_space<vmem>>, %arg6: memref<128x128xf32, #tpu.memory_space<vmem>>, %arg7: memref<1x128xf32, #tpu.memory_space<vmem>>, %arg8: memref<8x128xf32, #tpu.memory_space<vmem>>) attributes {dimension_semantics = [], scalar_prefetch = 0 : i64, scratch_operands = 0 : i64, tpu.core_type = #tpu.core_type<tc>} {
    %c0 = arith.constant 0 : index
    %c0_0 = arith.constant 0 : index
    %0 = vector.load %arg0[%c0, %c0_0] : memref<64x28xf32, #tpu.memory_space<vmem>>, vector<64x28xf32>
    %c0_1 = arith.constant 0 : index
    %c0_2 = arith.constant 0 : index
    %1 = vector.load %arg1[%c0_1, %c0_2] : memref<28x512xf32, #tpu.memory_space<vmem>>, vector<28x512xf32>
    %cst = arith.constant dense<0.000000e+00> : vector<64x512xf32>
    %2 = tpu.matmul %0, %1, %cst {dimension_numbers = #tpu.dot_dimension_numbers<[1], [0], [0], [1], [0, 0, 1, 1], [], []>} : vector<64x28xf32>, vector<28x512xf32>, vector<64x512xf32> -> vector<64x512xf32>
    %c0_3 = arith.constant 0 : index
    %c0_4 = arith.constant 0 : index
    %3 = vector.load %arg3[%c0_3, %c0_4] : memref<1x512xf32, #tpu.memory_space<vmem>>, vector<1x512xf32>
    %4 = vector.broadcast %3 : vector<1x512xf32> to vector<64x512xf32>
    %5 = arith.addf %2, %4 : vector<64x512xf32>
    %cst_5 = arith.constant 0.000000e+00 : f32
    %6 = vector.broadcast %cst_5 : f32 to vector<8x128xf32>
    %cst_6 = arith.constant 0.000000e+00 : f32
    %7 = vector.broadcast %cst_6 : f32 to vector<8x128xf32>
    %8 = vector.extract_strided_slice %5 {offsets = [0, 0], sizes = [8, 512], strides = [1, 1]} : vector<64x512xf32> to vector<8x512xf32>
    %c0_7 = arith.constant 0 : index
    %c0_8 = arith.constant 0 : index
    %9 = vector.load %arg2[%c0_7, %c0_8] : memref<128x512xf32, #tpu.memory_space<vmem>>, vector<128x512xf32>
    %cst_9 = arith.constant dense<0.000000e+00> : vector<8x512xf32>
    %10 = tpu.matmul %6, %9, %cst_9 {dimension_numbers = #tpu.dot_dimension_numbers<[1], [0], [0], [1], [0, 0, 1, 1], [], []>} : vector<8x128xf32>, vector<128x512xf32>, vector<8x512xf32> -> vector<8x512xf32>
    %11 = arith.addf %8, %10 : vector<8x512xf32>
    %12 = vector.extract_strided_slice %11 {offsets = [0, 0], sizes = [8, 128], strides = [1, 1]} : vector<8x512xf32> to vector<8x128xf32>
    %13 = arith.negf %12 : vector<8x128xf32>
    %14 = math.exp %13 : vector<8x128xf32>
    %cst_10 = arith.constant 1.000000e+00 : f32
    %15 = vector.broadcast %cst_10 : f32 to vector<8x128xf32>
    %16 = arith.addf %15, %14 : vector<8x128xf32>
    %17 = arith.divf %15, %16 : vector<8x128xf32>
    %18 = vector.extract_strided_slice %11 {offsets = [0, 128], sizes = [8, 128], strides = [1, 1]} : vector<8x512xf32> to vector<8x128xf32>
    %19 = arith.negf %18 : vector<8x128xf32>
    %20 = math.exp %19 : vector<8x128xf32>
    %cst_11 = arith.constant 1.000000e+00 : f32
    %21 = vector.broadcast %cst_11 : f32 to vector<8x128xf32>
    %22 = arith.addf %21, %20 : vector<8x128xf32>
    %23 = arith.divf %21, %22 : vector<8x128xf32>
    %24 = vector.extract_strided_slice %11 {offsets = [0, 256], sizes = [8, 128], strides = [1, 1]} : vector<8x512xf32> to vector<8x128xf32>
    %25 = math.tanh %24 : vector<8x128xf32>
    %26 = vector.extract_strided_slice %11 {offsets = [0, 384], sizes = [8, 128], strides = [1, 1]} : vector<8x512xf32> to vector<8x128xf32>
    %27 = arith.negf %26 : vector<8x128xf32>
    %28 = math.exp %27 : vector<8x128xf32>
    %cst_12 = arith.constant 1.000000e+00 : f32
    %29 = vector.broadcast %cst_12 : f32 to vector<8x128xf32>
    %30 = arith.addf %29, %28 : vector<8x128xf32>
    %31 = arith.divf %29, %30 : vector<8x128xf32>
    %32 = arith.mulf %23, %7 : vector<8x128xf32>
    %33 = arith.mulf %17, %25 : vector<8x128xf32>
    %34 = arith.addf %32, %33 : vector<8x128xf32>
    %35 = math.tanh %34 : vector<8x128xf32>
    %36 = arith.mulf %31, %35 : vector<8x128xf32>
    %37 = vector.extract_strided_slice %5 {offsets = [8, 0], sizes = [8, 512], strides = [1, 1]} : vector<64x512xf32> to vector<8x512xf32>
    %c0_13 = arith.constant 0 : index
    %c0_14 = arith.constant 0 : index
    %38 = vector.load %arg2[%c0_13, %c0_14] : memref<128x512xf32, #tpu.memory_space<vmem>>, vector<128x512xf32>
    %cst_15 = arith.constant dense<0.000000e+00> : vector<8x512xf32>
    %39 = tpu.matmul %36, %38, %cst_15 {dimension_numbers = #tpu.dot_dimension_numbers<[1], [0], [0], [1], [0, 0, 1, 1], [], []>} : vector<8x128xf32>, vector<128x512xf32>, vector<8x512xf32> -> vector<8x512xf32>
    %40 = arith.addf %37, %39 : vector<8x512xf32>
    %41 = vector.extract_strided_slice %40 {offsets = [0, 0], sizes = [8, 128], strides = [1, 1]} : vector<8x512xf32> to vector<8x128xf32>
    %42 = arith.negf %41 : vector<8x128xf32>
    %43 = math.exp %42 : vector<8x128xf32>
    %cst_16 = arith.constant 1.000000e+00 : f32
    %44 = vector.broadcast %cst_16 : f32 to vector<8x128xf32>
    %45 = arith.addf %44, %43 : vector<8x128xf32>
    %46 = arith.divf %44, %45 : vector<8x128xf32>
    %47 = vector.extract_strided_slice %40 {offsets = [0, 128], sizes = [8, 128], strides = [1, 1]} : vector<8x512xf32> to vector<8x128xf32>
    %48 = arith.negf %47 : vector<8x128xf32>
    %49 = math.exp %48 : vector<8x128xf32>
    %cst_17 = arith.constant 1.000000e+00 : f32
    %50 = vector.broadcast %cst_17 : f32 to vector<8x128xf32>
    %51 = arith.addf %50, %49 : vector<8x128xf32>
    %52 = arith.divf %50, %51 : vector<8x128xf32>
    %53 = vector.extract_strided_slice %40 {offsets = [0, 256], sizes = [8, 128], strides = [1, 1]} : vector<8x512xf32> to vector<8x128xf32>
    %54 = math.tanh %53 : vector<8x128xf32>
    %55 = vector.extract_strided_slice %40 {offsets = [0, 384], sizes = [8, 128], strides = [1, 1]} : vector<8x512xf32> to vector<8x128xf32>
    %56 = arith.negf %55 : vector<8x128xf32>
    %57 = math.exp %56 : vector<8x128xf32>
    %cst_18 = arith.constant 1.000000e+00 : f32
    %58 = vector.broadcast %cst_18 : f32 to vector<8x128xf32>
    %59 = arith.addf %58, %57 : vector<8x128xf32>
    %60 = arith.divf %58, %59 : vector<8x128xf32>
    %61 = arith.mulf %52, %34 : vector<8x128xf32>
    %62 = arith.mulf %46, %54 : vector<8x128xf32>
    %63 = arith.addf %61, %62 : vector<8x128xf32>
    %64 = math.tanh %63 : vector<8x128xf32>
    %65 = arith.mulf %60, %64 : vector<8x128xf32>
    %66 = vector.extract_strided_slice %5 {offsets = [16, 0], sizes = [8, 512], strides = [1, 1]} : vector<64x512xf32> to vector<8x512xf32>
    %c0_19 = arith.constant 0 : index
    %c0_20 = arith.constant 0 : index
    %67 = vector.load %arg2[%c0_19, %c0_20] : memref<128x512xf32, #tpu.memory_space<vmem>>, vector<128x512xf32>
    %cst_21 = arith.constant dense<0.000000e+00> : vector<8x512xf32>
    %68 = tpu.matmul %65, %67, %cst_21 {dimension_numbers = #tpu.dot_dimension_numbers<[1], [0], [0], [1], [0, 0, 1, 1], [], []>} : vector<8x128xf32>, vector<128x512xf32>, vector<8x512xf32> -> vector<8x512xf32>
    %69 = arith.addf %66, %68 : vector<8x512xf32>
    %70 = vector.extract_strided_slice %69 {offsets = [0, 0], sizes = [8, 128], strides = [1, 1]} : vector<8x512xf32> to vector<8x128xf32>
    %71 = arith.negf %70 : vector<8x128xf32>
    %72 = math.exp %71 : vector<8x128xf32>
    %cst_22 = arith.constant 1.000000e+00 : f32
    %73 = vector.broadcast %cst_22 : f32 to vector<8x128xf32>
    %74 = arith.addf %73, %72 : vector<8x128xf32>
    %75 = arith.divf %73, %74 : vector<8x128xf32>
    %76 = vector.extract_strided_slice %69 {offsets = [0, 128], sizes = [8, 128], strides = [1, 1]} : vector<8x512xf32> to vector<8x128xf32>
    %77 = arith.negf %76 : vector<8x128xf32>
    %78 = math.exp %77 : vector<8x128xf32>
    %cst_23 = arith.constant 1.000000e+00 : f32
    %79 = vector.broadcast %cst_23 : f32 to vector<8x128xf32>
    %80 = arith.addf %79, %78 : vector<8x128xf32>
    %81 = arith.divf %79, %80 : vector<8x128xf32>
    %82 = vector.extract_strided_slice %69 {offsets = [0, 256], sizes = [8, 128], strides = [1, 1]} : vector<8x512xf32> to vector<8x128xf32>
    %83 = math.tanh %82 : vector<8x128xf32>
    %84 = vector.extract_strided_slice %69 {offsets = [0, 384], sizes = [8, 128], strides = [1, 1]} : vector<8x512xf32> to vector<8x128xf32>
    %85 = arith.negf %84 : vector<8x128xf32>
    %86 = math.exp %85 : vector<8x128xf32>
    %cst_24 = arith.constant 1.000000e+00 : f32
    %87 = vector.broadcast %cst_24 : f32 to vector<8x128xf32>
    %88 = arith.addf %87, %86 : vector<8x128xf32>
    %89 = arith.divf %87, %88 : vector<8x128xf32>
    %90 = arith.mulf %81, %63 : vector<8x128xf32>
    %91 = arith.mulf %75, %83 : vector<8x128xf32>
    %92 = arith.addf %90, %91 : vector<8x128xf32>
    %93 = math.tanh %92 : vector<8x128xf32>
    %94 = arith.mulf %89, %93 : vector<8x128xf32>
    %95 = vector.extract_strided_slice %5 {offsets = [24, 0], sizes = [8, 512], strides = [1, 1]} : vector<64x512xf32> to vector<8x512xf32>
    %c0_25 = arith.constant 0 : index
    %c0_26 = arith.constant 0 : index
    %96 = vector.load %arg2[%c0_25, %c0_26] : memref<128x512xf32, #tpu.memory_space<vmem>>, vector<128x512xf32>
    %cst_27 = arith.constant dense<0.000000e+00> : vector<8x512xf32>
    %97 = tpu.matmul %94, %96, %cst_27 {dimension_numbers = #tpu.dot_dimension_numbers<[1], [0], [0], [1], [0, 0, 1, 1], [], []>} : vector<8x128xf32>, vector<128x512xf32>, vector<8x512xf32> -> vector<8x512xf32>
    %98 = arith.addf %95, %97 : vector<8x512xf32>
    %99 = vector.extract_strided_slice %98 {offsets = [0, 0], sizes = [8, 128], strides = [1, 1]} : vector<8x512xf32> to vector<8x128xf32>
    %100 = arith.negf %99 : vector<8x128xf32>
    %101 = math.exp %100 : vector<8x128xf32>
    %cst_28 = arith.constant 1.000000e+00 : f32
    %102 = vector.broadcast %cst_28 : f32 to vector<8x128xf32>
    %103 = arith.addf %102, %101 : vector<8x128xf32>
    %104 = arith.divf %102, %103 : vector<8x128xf32>
    %105 = vector.extract_strided_slice %98 {offsets = [0, 128], sizes = [8, 128], strides = [1, 1]} : vector<8x512xf32> to vector<8x128xf32>
    %106 = arith.negf %105 : vector<8x128xf32>
    %107 = math.exp %106 : vector<8x128xf32>
    %cst_29 = arith.constant 1.000000e+00 : f32
    %108 = vector.broadcast %cst_29 : f32 to vector<8x128xf32>
    %109 = arith.addf %108, %107 : vector<8x128xf32>
    %110 = arith.divf %108, %109 : vector<8x128xf32>
    %111 = vector.extract_strided_slice %98 {offsets = [0, 256], sizes = [8, 128], strides = [1, 1]} : vector<8x512xf32> to vector<8x128xf32>
    %112 = math.tanh %111 : vector<8x128xf32>
    %113 = vector.extract_strided_slice %98 {offsets = [0, 384], sizes = [8, 128], strides = [1, 1]} : vector<8x512xf32> to vector<8x128xf32>
    %114 = arith.negf %113 : vector<8x128xf32>
    %115 = math.exp %114 : vector<8x128xf32>
    %cst_30 = arith.constant 1.000000e+00 : f32
    %116 = vector.broadcast %cst_30 : f32 to vector<8x128xf32>
    %117 = arith.addf %116, %115 : vector<8x128xf32>
    %118 = arith.divf %116, %117 : vector<8x128xf32>
    %119 = arith.mulf %110, %92 : vector<8x128xf32>
    %120 = arith.mulf %104, %112 : vector<8x128xf32>
    %121 = arith.addf %119, %120 : vector<8x128xf32>
    %122 = math.tanh %121 : vector<8x128xf32>
    %123 = arith.mulf %118, %122 : vector<8x128xf32>
    %124 = vector.extract_strided_slice %5 {offsets = [32, 0], sizes = [8, 512], strides = [1, 1]} : vector<64x512xf32> to vector<8x512xf32>
    %c0_31 = arith.constant 0 : index
    %c0_32 = arith.constant 0 : index
    %125 = vector.load %arg2[%c0_31, %c0_32] : memref<128x512xf32, #tpu.memory_space<vmem>>, vector<128x512xf32>
    %cst_33 = arith.constant dense<0.000000e+00> : vector<8x512xf32>
    %126 = tpu.matmul %123, %125, %cst_33 {dimension_numbers = #tpu.dot_dimension_numbers<[1], [0], [0], [1], [0, 0, 1, 1], [], []>} : vector<8x128xf32>, vector<128x512xf32>, vector<8x512xf32> -> vector<8x512xf32>
    %127 = arith.addf %124, %126 : vector<8x512xf32>
    %128 = vector.extract_strided_slice %127 {offsets = [0, 0], sizes = [8, 128], strides = [1, 1]} : vector<8x512xf32> to vector<8x128xf32>
    %129 = arith.negf %128 : vector<8x128xf32>
    %130 = math.exp %129 : vector<8x128xf32>
    %cst_34 = arith.constant 1.000000e+00 : f32
    %131 = vector.broadcast %cst_34 : f32 to vector<8x128xf32>
    %132 = arith.addf %131, %130 : vector<8x128xf32>
    %133 = arith.divf %131, %132 : vector<8x128xf32>
    %134 = vector.extract_strided_slice %127 {offsets = [0, 128], sizes = [8, 128], strides = [1, 1]} : vector<8x512xf32> to vector<8x128xf32>
    %135 = arith.negf %134 : vector<8x128xf32>
    %136 = math.exp %135 : vector<8x128xf32>
    %cst_35 = arith.constant 1.000000e+00 : f32
    %137 = vector.broadcast %cst_35 : f32 to vector<8x128xf32>
    %138 = arith.addf %137, %136 : vector<8x128xf32>
    %139 = arith.divf %137, %138 : vector<8x128xf32>
    %140 = vector.extract_strided_slice %127 {offsets = [0, 256], sizes = [8, 128], strides = [1, 1]} : vector<8x512xf32> to vector<8x128xf32>
    %141 = math.tanh %140 : vector<8x128xf32>
    %142 = vector.extract_strided_slice %127 {offsets = [0, 384], sizes = [8, 128], strides = [1, 1]} : vector<8x512xf32> to vector<8x128xf32>
    %143 = arith.negf %142 : vector<8x128xf32>
    %144 = math.exp %143 : vector<8x128xf32>
    %cst_36 = arith.constant 1.000000e+00 : f32
    %145 = vector.broadcast %cst_36 : f32 to vector<8x128xf32>
    %146 = arith.addf %145, %144 : vector<8x128xf32>
    %147 = arith.divf %145, %146 : vector<8x128xf32>
    %148 = arith.mulf %139, %121 : vector<8x128xf32>
    %149 = arith.mulf %133, %141 : vector<8x128xf32>
    %150 = arith.addf %148, %149 : vector<8x128xf32>
    %151 = math.tanh %150 : vector<8x128xf32>
    %152 = arith.mulf %147, %151 : vector<8x128xf32>
    %153 = vector.extract_strided_slice %5 {offsets = [40, 0], sizes = [8, 512], strides = [1, 1]} : vector<64x512xf32> to vector<8x512xf32>
    %c0_37 = arith.constant 0 : index
    %c0_38 = arith.constant 0 : index
    %154 = vector.load %arg2[%c0_37, %c0_38] : memref<128x512xf32, #tpu.memory_space<vmem>>, vector<128x512xf32>
    %cst_39 = arith.constant dense<0.000000e+00> : vector<8x512xf32>
    %155 = tpu.matmul %152, %154, %cst_39 {dimension_numbers = #tpu.dot_dimension_numbers<[1], [0], [0], [1], [0, 0, 1, 1], [], []>} : vector<8x128xf32>, vector<128x512xf32>, vector<8x512xf32> -> vector<8x512xf32>
    %156 = arith.addf %153, %155 : vector<8x512xf32>
    %157 = vector.extract_strided_slice %156 {offsets = [0, 0], sizes = [8, 128], strides = [1, 1]} : vector<8x512xf32> to vector<8x128xf32>
    %158 = arith.negf %157 : vector<8x128xf32>
    %159 = math.exp %158 : vector<8x128xf32>
    %cst_40 = arith.constant 1.000000e+00 : f32
    %160 = vector.broadcast %cst_40 : f32 to vector<8x128xf32>
    %161 = arith.addf %160, %159 : vector<8x128xf32>
    %162 = arith.divf %160, %161 : vector<8x128xf32>
    %163 = vector.extract_strided_slice %156 {offsets = [0, 128], sizes = [8, 128], strides = [1, 1]} : vector<8x512xf32> to vector<8x128xf32>
    %164 = arith.negf %163 : vector<8x128xf32>
    %165 = math.exp %164 : vector<8x128xf32>
    %cst_41 = arith.constant 1.000000e+00 : f32
    %166 = vector.broadcast %cst_41 : f32 to vector<8x128xf32>
    %167 = arith.addf %166, %165 : vector<8x128xf32>
    %168 = arith.divf %166, %167 : vector<8x128xf32>
    %169 = vector.extract_strided_slice %156 {offsets = [0, 256], sizes = [8, 128], strides = [1, 1]} : vector<8x512xf32> to vector<8x128xf32>
    %170 = math.tanh %169 : vector<8x128xf32>
    %171 = vector.extract_strided_slice %156 {offsets = [0, 384], sizes = [8, 128], strides = [1, 1]} : vector<8x512xf32> to vector<8x128xf32>
    %172 = arith.negf %171 : vector<8x128xf32>
    %173 = math.exp %172 : vector<8x128xf32>
    %cst_42 = arith.constant 1.000000e+00 : f32
    %174 = vector.broadcast %cst_42 : f32 to vector<8x128xf32>
    %175 = arith.addf %174, %173 : vector<8x128xf32>
    %176 = arith.divf %174, %175 : vector<8x128xf32>
    %177 = arith.mulf %168, %150 : vector<8x128xf32>
    %178 = arith.mulf %162, %170 : vector<8x128xf32>
    %179 = arith.addf %177, %178 : vector<8x128xf32>
    %180 = math.tanh %179 : vector<8x128xf32>
    %181 = arith.mulf %176, %180 : vector<8x128xf32>
    %182 = vector.extract_strided_slice %5 {offsets = [48, 0], sizes = [8, 512], strides = [1, 1]} : vector<64x512xf32> to vector<8x512xf32>
    %c0_43 = arith.constant 0 : index
    %c0_44 = arith.constant 0 : index
    %183 = vector.load %arg2[%c0_43, %c0_44] : memref<128x512xf32, #tpu.memory_space<vmem>>, vector<128x512xf32>
    %cst_45 = arith.constant dense<0.000000e+00> : vector<8x512xf32>
    %184 = tpu.matmul %181, %183, %cst_45 {dimension_numbers = #tpu.dot_dimension_numbers<[1], [0], [0], [1], [0, 0, 1, 1], [], []>} : vector<8x128xf32>, vector<128x512xf32>, vector<8x512xf32> -> vector<8x512xf32>
    %185 = arith.addf %182, %184 : vector<8x512xf32>
    %186 = vector.extract_strided_slice %185 {offsets = [0, 0], sizes = [8, 128], strides = [1, 1]} : vector<8x512xf32> to vector<8x128xf32>
    %187 = arith.negf %186 : vector<8x128xf32>
    %188 = math.exp %187 : vector<8x128xf32>
    %cst_46 = arith.constant 1.000000e+00 : f32
    %189 = vector.broadcast %cst_46 : f32 to vector<8x128xf32>
    %190 = arith.addf %189, %188 : vector<8x128xf32>
    %191 = arith.divf %189, %190 : vector<8x128xf32>
    %192 = vector.extract_strided_slice %185 {offsets = [0, 128], sizes = [8, 128], strides = [1, 1]} : vector<8x512xf32> to vector<8x128xf32>
    %193 = arith.negf %192 : vector<8x128xf32>
    %194 = math.exp %193 : vector<8x128xf32>
    %cst_47 = arith.constant 1.000000e+00 : f32
    %195 = vector.broadcast %cst_47 : f32 to vector<8x128xf32>
    %196 = arith.addf %195, %194 : vector<8x128xf32>
    %197 = arith.divf %195, %196 : vector<8x128xf32>
    %198 = vector.extract_strided_slice %185 {offsets = [0, 256], sizes = [8, 128], strides = [1, 1]} : vector<8x512xf32> to vector<8x128xf32>
    %199 = math.tanh %198 : vector<8x128xf32>
    %200 = vector.extract_strided_slice %185 {offsets = [0, 384], sizes = [8, 128], strides = [1, 1]} : vector<8x512xf32> to vector<8x128xf32>
    %201 = arith.negf %200 : vector<8x128xf32>
    %202 = math.exp %201 : vector<8x128xf32>
    %cst_48 = arith.constant 1.000000e+00 : f32
    %203 = vector.broadcast %cst_48 : f32 to vector<8x128xf32>
    %204 = arith.addf %203, %202 : vector<8x128xf32>
    %205 = arith.divf %203, %204 : vector<8x128xf32>
    %206 = arith.mulf %197, %179 : vector<8x128xf32>
    %207 = arith.mulf %191, %199 : vector<8x128xf32>
    %208 = arith.addf %206, %207 : vector<8x128xf32>
    %209 = math.tanh %208 : vector<8x128xf32>
    %210 = arith.mulf %205, %209 : vector<8x128xf32>
    %211 = vector.extract_strided_slice %5 {offsets = [56, 0], sizes = [8, 512], strides = [1, 1]} : vector<64x512xf32> to vector<8x512xf32>
    %c0_49 = arith.constant 0 : index
    %c0_50 = arith.constant 0 : index
    %212 = vector.load %arg2[%c0_49, %c0_50] : memref<128x512xf32, #tpu.memory_space<vmem>>, vector<128x512xf32>
    %cst_51 = arith.constant dense<0.000000e+00> : vector<8x512xf32>
    %213 = tpu.matmul %210, %212, %cst_51 {dimension_numbers = #tpu.dot_dimension_numbers<[1], [0], [0], [1], [0, 0, 1, 1], [], []>} : vector<8x128xf32>, vector<128x512xf32>, vector<8x512xf32> -> vector<8x512xf32>
    %214 = arith.addf %211, %213 : vector<8x512xf32>
    %215 = vector.extract_strided_slice %214 {offsets = [0, 0], sizes = [8, 128], strides = [1, 1]} : vector<8x512xf32> to vector<8x128xf32>
    %216 = arith.negf %215 : vector<8x128xf32>
    %217 = math.exp %216 : vector<8x128xf32>
    %cst_52 = arith.constant 1.000000e+00 : f32
    %218 = vector.broadcast %cst_52 : f32 to vector<8x128xf32>
    %219 = arith.addf %218, %217 : vector<8x128xf32>
    %220 = arith.divf %218, %219 : vector<8x128xf32>
    %221 = vector.extract_strided_slice %214 {offsets = [0, 128], sizes = [8, 128], strides = [1, 1]} : vector<8x512xf32> to vector<8x128xf32>
    %222 = arith.negf %221 : vector<8x128xf32>
    %223 = math.exp %222 : vector<8x128xf32>
    %cst_53 = arith.constant 1.000000e+00 : f32
    %224 = vector.broadcast %cst_53 : f32 to vector<8x128xf32>
    %225 = arith.addf %224, %223 : vector<8x128xf32>
    %226 = arith.divf %224, %225 : vector<8x128xf32>
    %227 = vector.extract_strided_slice %214 {offsets = [0, 256], sizes = [8, 128], strides = [1, 1]} : vector<8x512xf32> to vector<8x128xf32>
    %228 = math.tanh %227 : vector<8x128xf32>
    %229 = vector.extract_strided_slice %214 {offsets = [0, 384], sizes = [8, 128], strides = [1, 1]} : vector<8x512xf32> to vector<8x128xf32>
    %230 = arith.negf %229 : vector<8x128xf32>
    %231 = math.exp %230 : vector<8x128xf32>
    %cst_54 = arith.constant 1.000000e+00 : f32
    %232 = vector.broadcast %cst_54 : f32 to vector<8x128xf32>
    %233 = arith.addf %232, %231 : vector<8x128xf32>
    %234 = arith.divf %232, %233 : vector<8x128xf32>
    %235 = arith.mulf %226, %208 : vector<8x128xf32>
    %236 = arith.mulf %220, %228 : vector<8x128xf32>
    %237 = arith.addf %235, %236 : vector<8x128xf32>
    %238 = math.tanh %237 : vector<8x128xf32>
    %239 = arith.mulf %234, %238 : vector<8x128xf32>
    %c0_55 = arith.constant 0 : index
    %c0_56 = arith.constant 0 : index
    %240 = vector.load %arg4[%c0_55, %c0_56] : memref<128x128xf32, #tpu.memory_space<vmem>>, vector<128x128xf32>
    %cst_57 = arith.constant dense<0.000000e+00> : vector<8x128xf32>
    %241 = tpu.matmul %239, %240, %cst_57 {dimension_numbers = #tpu.dot_dimension_numbers<[1], [0], [0], [1], [0, 0, 1, 1], [], []>} : vector<8x128xf32>, vector<128x128xf32>, vector<8x128xf32> -> vector<8x128xf32>
    %c0_58 = arith.constant 0 : index
    %c0_59 = arith.constant 0 : index
    %242 = vector.load %arg5[%c0_58, %c0_59] : memref<1x128xf32, #tpu.memory_space<vmem>>, vector<1x128xf32>
    %243 = vector.broadcast %242 : vector<1x128xf32> to vector<8x128xf32>
    %244 = arith.addf %241, %243 : vector<8x128xf32>
    %cst_60 = arith.constant 0.000000e+00 : f32
    %245 = vector.broadcast %cst_60 : f32 to vector<8x128xf32>
    %246 = arith.maximumf %244, %245 : vector<8x128xf32>
    %c0_61 = arith.constant 0 : index
    %c0_62 = arith.constant 0 : index
    %247 = vector.load %arg6[%c0_61, %c0_62] : memref<128x128xf32, #tpu.memory_space<vmem>>, vector<128x128xf32>
    %cst_63 = arith.constant dense<0.000000e+00> : vector<8x128xf32>
    %248 = tpu.matmul %246, %247, %cst_63 {dimension_numbers = #tpu.dot_dimension_numbers<[1], [0], [0], [1], [0, 0, 1, 1], [], []>} : vector<8x128xf32>, vector<128x128xf32>, vector<8x128xf32> -> vector<8x128xf32>
    %c0_64 = arith.constant 0 : index
    %c0_65 = arith.constant 0 : index
    %249 = vector.load %arg7[%c0_64, %c0_65] : memref<1x128xf32, #tpu.memory_space<vmem>>, vector<1x128xf32>
    %250 = vector.broadcast %249 : vector<1x128xf32> to vector<8x128xf32>
    %251 = arith.addf %248, %250 : vector<8x128xf32>
    %cst_66 = arith.constant 0.000000e+00 : f32
    %252 = vector.broadcast %cst_66 : f32 to vector<8x128xf32>
    %253 = arith.maximumf %251, %252 : vector<8x128xf32>
    %c0_67 = arith.constant 0 : index
    %c0_68 = arith.constant 0 : index
    %254 = vector.load %arg8[%c0_67, %c0_68] : memref<8x128xf32, #tpu.memory_space<vmem>>, vector<8x128xf32>
    tpu.vector_store %arg8[%c0_67, %c0_68], %253 {strides = array<i32>} : memref<8x128xf32, #tpu.memory_space<vmem>>, vector<8x128xf32>,
    return
  }
}

</mosaic_0001>

<llo_original>
// kernel: tpu_custom_call.1
$region0: #{tpu_custom_call.1}
  #allocation0 [shape = 'u32[]', space=smem, size = 0x4, offset = 0x4, fixed_abs, tag = 'smem constant byte address 0x4 - core index']
  #allocation1 [shape = 'u32[144,128]{1,0:T(1,128)}', space=vmem, size = 0x12000, scoped, tag = 'internal scratch']
  %s0 = inlined_call_operand.vmem [shape: f32[64,28], index: 0, kind: input, shape index: {}]
  %s1 = inlined_call_operand.hbm [shape: f32[28,512], index: 1, kind: input, shape index: {}]
  %s2 = inlined_call_operand.hbm [shape: f32[128,512], index: 2, kind: input, shape index: {}]
  %s3 = inlined_call_operand.vmem [shape: f32[1,512], index: 3, kind: input, shape index: {}]
  %s4 = inlined_call_operand.hbm [shape: f32[128,128], index: 4, kind: input, shape index: {}]
  %s5 = inlined_call_operand.vmem [shape: f32[1,128], index: 5, kind: input, shape index: {}]
  %s6 = inlined_call_operand.hbm [shape: f32[128,128], index: 6, kind: input, shape index: {}]
  %s7 = inlined_call_operand.vmem [shape: f32[1,128], index: 7, kind: input, shape index: {}]
  %s8 = inlined_call_operand.hbm [shape: f32[8,128], index: 8, kind: output, shape index: {}]
  %s9 = sld [smem:[#allocation0]]
  $region58: #{tpu_custom_call.1} parent=0
    _
  %s11 = ssub.s32 1, %s9
  %s12 = scalar_select 0, %s11, %s9
  $region1: #{tpu_custom_call.1} parent=0
    #allocation2 [shape = 'u8[65536]{0}', space=vmem, size = 0x10000, scoped, tag = 'input window, operand 1, single buffered']
    #allocation3 [shape = 's32[1]{0}', space=sflag, size = 0x4, scoped, tag = 'scoped memory for tpu_custom_call.1']
    #allocation4 [shape = 's32[1]{0}', space=sflag, size = 0x4, scoped, tag = 'scoped memory for tpu_custom_call.1']
    #allocation5 [shape = 'u8[262144]{0}', space=vmem, size = 0x40000, scoped, tag = 'input window, operand 2, single buffered']
    #allocation6 [shape = 's32[1]{0}', space=sflag, size = 0x4, scoped, tag = 'scoped memory for tpu_custom_call.1']
    #allocation7 [shape = 'u8[65536]{0}', space=vmem, size = 0x10000, scoped, tag = 'input window, operand 4, single buffered']
    #allocation8 [shape = 'u8[65536]{0}', space=vmem, size = 0x10000, scoped, tag = 'input window, operand 6, single buffered']
    #allocation9 [shape = 's32[1]{0}', space=sflag, size = 0x4, scoped, tag = 'scoped memory for tpu_custom_call.1']
    #allocation10 [shape = 'u8[4096]{0}', space=vmem, size = 0x1000, scoped, tag = 'output window, operand 0, single buffered']
    %13 = vsyncpa [#allocation3], 0
    %14 = vsyncpa [#allocation6], 0
    %15 = vsyncpa [#allocation9], 0
    %16 = vsyncpa [#allocation4], 0
    // Predicated region
    $region2: #{tpu_custom_call.1} parent=1 // pred_check
      _
    $region3: #{tpu_custom_call.1} parent=1 // pred_check_branch
      %18 = sbr.rel (0) target = $region5
    $region4: #{tpu_custom_call.1} parent=1 // pred_region
      _
    $region5: #{tpu_custom_call.1} parent=1 // pred_fallthru
      _
    // Predicated region
    $region6: #{tpu_custom_call.1} parent=1 // pred_check
      _
    $region7: #{tpu_custom_call.1} parent=1 // pred_check_branch
      %20 = sbr.rel (0) target = $region9
    $region8: #{tpu_custom_call.1} parent=1 // pred_region
      %s22 = ssub.s32 2048, 2048
      %23 = vsyncadd [#allocation3], %s22
      %s24 = sshll.u32 [#allocation2], 4
      %s25 = int_to_ptr.vmem [resolvable:$true] %s24
      %30 = dma.hbm_to_vmem [thread:$0]  %s1, 2048, %s25, [#allocation3], 512, 512, 32
    $region9: #{tpu_custom_call.1} parent=1 // pred_fallthru
      _
    // Predicated region
    $region10: #{tpu_custom_call.1} parent=1 // pred_check
      _
    $region11: #{tpu_custom_call.1} parent=1 // pred_check_branch
      %32 = sbr.rel (0) target = $region13
    $region12: #{tpu_custom_call.1} parent=1 // pred_region
      %s34 = ssub.s32 8192, 8192
      %35 = vsyncadd [#allocation6], %s34
      %s36 = sshll.u32 [#allocation5], 4
      %s37 = int_to_ptr.vmem [resolvable:$true] %s36
      %42 = dma.hbm_to_vmem [thread:$0]  %s2, 8192, %s37, [#allocation6], 512, 512, 32
    $region13: #{tpu_custom_call.1} parent=1 // pred_fallthru
      _
    // Predicated region
    $region14: #{tpu_custom_call.1} parent=1 // pred_check
      _
    $region15: #{tpu_custom_call.1} parent=1 // pred_check_branch
      %44 = sbr.rel (0) target = $region17
    $region16: #{tpu_custom_call.1} parent=1 // pred_region
      _
    $region17: #{tpu_custom_call.1} parent=1 // pred_fallthru
      _
    // Predicated region
    $region18: #{tpu_custom_call.1} parent=1 // pred_check
      _
    $region19: #{tpu_custom_call.1} parent=1 // pred_check_branch
      %46 = sbr.rel (0) target = $region21
    $region20: #{tpu_custom_call.1} parent=1 // pred_region
      %s48 = ssub.s32 2048, 2048
      %49 = vsyncadd [#allocation6], %s48
      %s50 = sshll.u32 [#allocation7], 4
      %s51 = int_to_ptr.vmem [resolvable:$true] %s50
      %56 = dma.hbm_to_vmem [thread:$0]  %s4, 2048, %s51, [#allocation6], 128, 128, 8
    $region21: #{tpu_custom_call.1} parent=1 // pred_fallthru
      _
    // Predicated region
    $region22: #{tpu_custom_call.1} parent=1 // pred_check
      _
    $region23: #{tpu_custom_call.1} parent=1 // pred_check_branch
      %58 = sbr.rel (0) target = $region25
    $region24: #{tpu_custom_call.1} parent=1 // pred_region
      _
    $region25: #{tpu_custom_call.1} parent=1 // pred_fallthru
      _
    // Predicated region
    $region26: #{tpu_custom_call.1} parent=1 // pred_check
      _
    $region27: #{tpu_custom_call.1} parent=1 // pred_check_branch
      %60 = sbr.rel (0) target = $region29
    $region28: #{tpu_custom_call.1} parent=1 // pred_region
      %s62 = ssub.s32 2048, 2048
      %63 = vsyncadd [#allocation9], %s62
      %s64 = sshll.u32 [#allocation8], 4
      %s65 = int_to_ptr.vmem [resolvable:$true] %s64
      %70 = dma.hbm_to_vmem [thread:$0]  %s6, 2048, %s65, [#allocation9], 128, 128, 8
    $region29: #{tpu_custom_call.1} parent=1 // pred_fallthru
      _
    // Predicated region
    $region30: #{tpu_custom_call.1} parent=1 // pred_check
      _
    $region31: #{tpu_custom_call.1} parent=1 // pred_check_branch
      %72 = sbr.rel (0) target = $region33
    $region32: #{tpu_custom_call.1} parent=1 // pred_region
      _
    $region33: #{tpu_custom_call.1} parent=1 // pred_fallthru
      _
    // Predicated region
    $region34: #{tpu_custom_call.1} parent=1 // pred_check
      _
    $region35: #{tpu_custom_call.1} parent=1 // pred_check_branch
      %74 = sbr.rel (0) target = $region37
    $region36: #{tpu_custom_call.1} parent=1 // pred_region
      %75 = dma.done [#allocation3], 2048
    $region37: #{tpu_custom_call.1} parent=1 // pred_fallthru
      _
    // Predicated region
    $region38: #{tpu_custom_call.1} parent=1 // pred_check
      _
    $region39: #{tpu_custom_call.1} parent=1 // pred_check_branch
      %77 = sbr.rel (0) target = $region41
    $region40: #{tpu_custom_call.1} parent=1 // pred_region
      %78 = dma.done [#allocation6], 8192
    $region41: #{tpu_custom_call.1} parent=1 // pred_fallthru
      _
    // Predicated region
    $region42: #{tpu_custom_call.1} parent=1 // pred_check
      _
    $region43: #{tpu_custom_call.1} parent=1 // pred_check_branch
      %80 = sbr.rel (0) target = $region45
    $region44: #{tpu_custom_call.1} parent=1 // pred_region
      %81 = dma.done [#allocation6], 2048
    $region45: #{tpu_custom_call.1} parent=1 // pred_fallthru
      _
    // Predicated region
    $region46: #{tpu_custom_call.1} parent=1 // pred_check
      _
    $region47: #{tpu_custom_call.1} parent=1 // pred_check_branch
      %83 = sbr.rel (0) target = $region49
    $region48: #{tpu_custom_call.1} parent=1 // pred_region
      %84 = dma.done [#allocation9], 2048
    $region49: #{tpu_custom_call.1} parent=1 // pred_fallthru
      _
    %v85 = vld [vmem:[%s0] sm:$0xff]
    %v86 = vld [vmem:[%s0 + $0x8] sm:$0xff]
    %v87 = vld [vmem:[%s0 + $0x10] sm:$0xff]
    %v88 = vld [vmem:[%s0 + $0x18] sm:$0xff]
    %v89 = vld [vmem:[%s0 + $0x20] sm:$0xff]
    %v90 = vld [vmem:[%s0 + $0x28] sm:$0xff]
    %v91 = vld [vmem:[%s0 + $0x30] sm:$0xff]
    %v92 = vld [vmem:[%s0 + $0x38] sm:$0xff]
    %v93 = vld [vmem:[#allocation2] sm:$0xff]
    %v94 = vld [vmem:[#allocation2 + $0x8] sm:$0xff]
    %v95 = vld [vmem:[#allocation2 + $0x10] sm:$0xff]
    %v96 = vld [vmem:[#allocation2 + $0x18] sm:$0xff]
    %v97 = vld [vmem:[#allocation2 + $0x20] sm:$0xff]
    %v98 = vld [vmem:[#allocation2 + $0x28] sm:$0xff]
    %v99 = vld [vmem:[#allocation2 + $0x30] sm:$0xff]
    %v100 = vld [vmem:[#allocation2 + $0x38] sm:$0xff]
    %v101 = vld [vmem:[#allocation2 + $0x40] sm:$0xff]
    %v102 = vld [vmem:[#allocation2 + $0x48] sm:$0xff]
    %v103 = vld [vmem:[#allocation2 + $0x50] sm:$0xff]
    %v104 = vld [vmem:[#allocation2 + $0x58] sm:$0xff]
    %v105 = vld [vmem:[#allocation2 + $0x60] sm:$0xf]
    %v106 = vld [vmem:[#allocation2 + $0x68] sm:$0xf]
    %v107 = vld [vmem:[#allocation2 + $0x70] sm:$0xf]
    %v108 = vld [vmem:[#allocation2 + $0x78] sm:$0xf]
    %v109 = vld [vmem:[%s3] sm:$0xf]
    %v111 = vlaneseq
    %v112 = vshrl.u32 %v111, 7
    %v113 = vsub.s32 0, %v112
    %v114 = vrot.slane %v109, %v113
    %v115 = vlaneseq
    %v116 = vshrl.u32 %v115, 7
    %v117 = vsub.s32 1, %v116
    %v118 = vrot.slane %v109, %v117
    %v119 = vlaneseq
    %v120 = vshrl.u32 %v119, 7
    %v121 = vsub.s32 2, %v120
    %v122 = vrot.slane %v109, %v121
    %v123 = vlaneseq
    %v124 = vshrl.u32 %v123, 7
    %v125 = vsub.s32 3, %v124
    %v126 = vrot.slane %v109, %v125
    %vm131 = vcmask 228352
    %v133 = vsel %vm131, %v85, 0
    %v136 = vsel %vm131, %v86, 0
    %v139 = vsel %vm131, %v87, 0
    %v142 = vsel %vm131, %v88, 0
    %v145 = vsel %vm131, %v89, 0
    %v148 = vsel %vm131, %v90, 0
    %v151 = vsel %vm131, %v91, 0
    %v154 = vsel %vm131, %v92, 0
    %vm156 = vcmask 1043456
    %v158 = vsel %vm156, %v105, 0
    %v161 = vsel %vm156, %v106, 0
    %v164 = vsel %vm156, %v107, 0
    %v167 = vsel %vm156, %v108, 0
    %169 = vmatprep.subr.mxu0 0.0
    %170 = vmatpush1.msra.mxu0 0.0
    %171 = vmatprep.subr.mxu0 0.0
    %172 = vmatpush1.msra.mxu0 0.0
    %173 = vmatprep.subr.mxu0 0.0
    %174 = vmatpush1.msra.mxu0 0.0
    %175 = vmatprep.subr.mxu0 0.0
    %176 = vmatpush1.msra.mxu0 0.0
    %177 = vmatprep.subr.mxu0 0.0
    %178 = vmatpush1.msra.mxu0 0.0
    %179 = vmatprep.subr.mxu0 0.0
    %180 = vmatpush1.msra.mxu0 0.0
    %181 = vmatprep.subr.mxu0 0.0
    %182 = vmatpush1.msra.mxu0 0.0
    %183 = vmatprep.subr.mxu0 0.0
    %184 = vmatpush1.msra.mxu0 0.0
    %185 = vmatprep.subr.mxu0 0.0
    %186 = vmatpush1.msra.mxu0 0.0
    %187 = vmatprep.subr.mxu0 0.0
    %188 = vmatpush1.msra.mxu0 0.0
    %189 = vmatprep.subr.mxu0 0.0
    %190 = vmatpush1.msra.mxu0 0.0
    %191 = vmatprep.subr.mxu0 0.0
    %192 = vmatpush1.msra.mxu0 0.0
    %193 = vmatprep.subr.mxu0 %v161
    %194 = vmatpush1.msra.mxu0 %v158
    %195 = vmatprep.subr.mxu0 %v102
    %196 = vmatpush1.msra.mxu0 %v101
    %197 = vmatprep.subr.mxu0 %v98
    %198 = vmatpush1.msra.mxu0 %v97
    %199 = vmatprep.subr.mxu0 %v94
    %200 = vmatpush1.msra.mxu0 %v93
    %201 = vmatprep.subr.mxu0 0.0
    %202 = vmatpush2.msra.mxu0 0.0
    %203 = vmatprep.subr.mxu0 0.0
    %204 = vmatpush2.msra.mxu0 0.0
    %205 = vmatprep.subr.mxu0 0.0
    %206 = vmatpush2.msra.mxu0 0.0
    %207 = vmatprep.subr.mxu0 0.0
    %208 = vmatpush2.msra.mxu0 0.0
    %209 = vmatprep.subr.mxu0 0.0
    %210 = vmatpush2.msra.mxu0 0.0
    %211 = vmatprep.subr.mxu0 0.0
    %212 = vmatpush2.msra.mxu0 0.0
    %213 = vmatprep.subr.mxu0 0.0
    %214 = vmatpush2.msra.mxu0 0.0
    %215 = vmatprep.subr.mxu0 0.0
    %216 = vmatpush2.msra.mxu0 0.0
    %217 = vmatprep.subr.mxu0 0.0
    %218 = vmatpush2.msra.mxu0 0.0
    %219 = vmatprep.subr.mxu0 0.0
    %220 = vmatpush2.msra.mxu0 0.0
    %221 = vmatprep.subr.mxu0 0.0
    %222 = vmatpush2.msra.mxu0 0.0
    %223 = vmatprep.subr.mxu0 0.0
    %224 = vmatpush2.msra.mxu0 0.0
    %225 = vmatprep.subr.mxu0 0.0
    %226 = vmatpush2.msra.mxu0 0.0
    %227 = vmatprep.subr.mxu0 0.0
    %228 = vmatpush2.msra.mxu0 0.0
    %229 = vmatprep.subr.mxu0 0.0
    %230 = vmatpush2.msra.mxu0 0.0
    %231 = vmatprep.subr.mxu0 0.0
    %232 = vmatpush2.msra.mxu0 0.0
    %233 = vmatprep.mubr.f32.mxu0 0.0
    %234 = vmatmul.mubr.f32.gmra.mxu0 %v133
    %v235 = vpop.f32.mrf.mxu0
    %v236 = vadd.f32 %v114, %v235
    %v237 = vpop.f32.mrf.mxu0
    %v238 = vadd.f32 %v118, %v237
    %239 = vmatprep.mubr.f32.mxu0 0.0
    %240 = vmatmul.mubr.f32.gmra.mxu0 %v136
    %v241 = vpop.f32.mrf.mxu0
    %v242 = vadd.f32 %v114, %v241
    %v243 = vpop.f32.mrf.mxu0
    %v244 = vadd.f32 %v118, %v243
    %245 = vmatprep.mubr.f32.mxu0 0.0
    %246 = vmatmul.mubr.f32.gmra.mxu0 %v139
    %v247 = vpop.f32.mrf.mxu0
    %v248 = vadd.f32 %v114, %v247
    %v249 = vpop.f32.mrf.mxu0
    %v250 = vadd.f32 %v118, %v249
    %251 = vmatprep.mubr.f32.mxu0 0.0
    %252 = vmatmul.mubr.f32.gmra.mxu0 %v142
    %v253 = vpop.f32.mrf.mxu0
    %v254 = vadd.f32 %v114, %v253
    %v255 = vpop.f32.mrf.mxu0
    %v256 = vadd.f32 %v118, %v255
    %257 = vmatprep.mubr.f32.mxu0 0.0
    %258 = vmatmul.mubr.f32.gmra.mxu0 %v145
    %v259 = vpop.f32.mrf.mxu0
    %v260 = vadd.f32 %v114, %v259
    %v261 = vpop.f32.mrf.mxu0
    %v262 = vadd.f32 %v118, %v261
    %263 = vmatprep.mubr.f32.mxu0 0.0
    %264 = vmatmul.mubr.f32.gmra.mxu0 %v148
    %v265 = vpop.f32.mrf.mxu0
    %v266 = vadd.f32 %v114, %v265
    %v267 = vpop.f32.mrf.mxu0
    %v268 = vadd.f32 %v118, %v267
    %269 = vmatprep.mubr.f32.mxu0 0.0
    %270 = vmatmul.mubr.f32.gmra.mxu0 %v151
    %v271 = vpop.f32.mrf.mxu0
    %v272 = vadd.f32 %v114, %v271
    %v273 = vpop.f32.mrf.mxu0
    %v274 = vadd.f32 %v118, %v273
    %275 = vmatprep.mubr.f32.mxu0 0.0
    %276 = vmatmul.mubr.f32.gmra.mxu0 %v154
    %v277 = vpop.f32.mrf.mxu0
    %v278 = vadd.f32 %v114, %v277
    %v279 = vpop.f32.mrf.mxu0
    %v280 = vadd.f32 %v118, %v279
    %281 = vdwg.mxu0
    %282 = vmatprep.subr.mxu0 0.0
    %283 = vmatpush1.msra.mxu0 0.0
    %284 = vmatprep.subr.mxu0 0.0
    %285 = vmatpush1.msra.mxu0 0.0
    %286 = vmatprep.subr.mxu0 0.0
    %287 = vmatpush1.msra.mxu0 0.0
    %288 = vmatprep.subr.mxu0 0.0
    %289 = vmatpush1.msra.mxu0 0.0
    %290 = vmatprep.subr.mxu0 0.0
    %291 = vmatpush1.msra.mxu0 0.0
    %292 = vmatprep.subr.mxu0 0.0
    %293 = vmatpush1.msra.mxu0 0.0
    %294 = vmatprep.subr.mxu0 0.0
    %295 = vmatpush1.msra.mxu0 0.0
    %296 = vmatprep.subr.mxu0 0.0
    %297 = vmatpush1.msra.mxu0 0.0
    %298 = vmatprep.subr.mxu0 0.0
    %299 = vmatpush1.msra.mxu0 0.0
    %300 = vmatprep.subr.mxu0 0.0
    %301 = vmatpush1.msra.mxu0 0.0
    %302 = vmatprep.subr.mxu0 0.0
    %303 = vmatpush1.msra.mxu0 0.0
    %304 = vmatprep.subr.mxu0 0.0
    %305 = vmatpush1.msra.mxu0 0.0
    %306 = vmatprep.subr.mxu0 %v167
    %307 = vmatpush1.msra.mxu0 %v164
    %308 = vmatprep.subr.mxu0 %v104
    %309 = vmatpush1.msra.mxu0 %v103
    %310 = vmatprep.subr.mxu0 %v100
    %311 = vmatpush1.msra.mxu0 %v99
    %312 = vmatprep.subr.mxu0 %v96
    %313 = vmatpush1.msra.mxu0 %v95
    %314 = vmatprep.subr.mxu0 0.0
    %315 = vmatpush2.msra.mxu0 0.0
    %316 = vmatprep.subr.mxu0 0.0
    %317 = vmatpush2.msra.mxu0 0.0
    %318 = vmatprep.subr.mxu0 0.0
    %319 = vmatpush2.msra.mxu0 0.0
    %320 = vmatprep.subr.mxu0 0.0
    %321 = vmatpush2.msra.mxu0 0.0
    %322 = vmatprep.subr.mxu0 0.0
    %323 = vmatpush2.msra.mxu0 0.0
    %324 = vmatprep.subr.mxu0 0.0
    %325 = vmatpush2.msra.mxu0 0.0
    %326 = vmatprep.subr.mxu0 0.0
    %327 = vmatpush2.msra.mxu0 0.0
    %328 = vmatprep.subr.mxu0 0.0
    %329 = vmatpush2.msra.mxu0 0.0
    %330 = vmatprep.subr.mxu0 0.0
    %331 = vmatpush2.msra.mxu0 0.0
    %332 = vmatprep.subr.mxu0 0.0
    %333 = vmatpush2.msra.mxu0 0.0
    %334 = vmatprep.subr.mxu0 0.0
    %335 = vmatpush2.msra.mxu0 0.0
    %336 = vmatprep.subr.mxu0 0.0
    %337 = vmatpush2.msra.mxu0 0.0
    %338 = vmatprep.subr.mxu0 0.0
    %339 = vmatpush2.msra.mxu0 0.0
    %340 = vmatprep.subr.mxu0 0.0
    %341 = vmatpush2.msra.mxu0 0.0
    %342 = vmatprep.subr.mxu0 0.0
    %343 = vmatpush2.msra.mxu0 0.0
    %344 = vmatprep.subr.mxu0 0.0
    %345 = vmatpush2.msra.mxu0 0.0
    %346 = vmatprep.mubr.f32.mxu0 0.0
    %347 = vmatmul.mubr.f32.gmra.mxu0 %v133
    %v348 = vpop.f32.mrf.mxu0
    %v349 = vadd.f32 %v122, %v348
    %v350 = vpop.f32.mrf.mxu0
    %v351 = vadd.f32 %v126, %v350
    %352 = vmatprep.mubr.f32.mxu0 0.0
    %353 = vmatmul.mubr.f32.gmra.mxu0 %v136
    %v354 = vpop.f32.mrf.mxu0
    %v355 = vadd.f32 %v122, %v354
    %v356 = vpop.f32.mrf.mxu0
    %v357 = vadd.f32 %v126, %v356
    %358 = vmatprep.mubr.f32.mxu0 0.0
    %359 = vmatmul.mubr.f32.gmra.mxu0 %v139
    %v360 = vpop.f32.mrf.mxu0
    %v361 = vadd.f32 %v122, %v360
    %v362 = vpop.f32.mrf.mxu0
    %v363 = vadd.f32 %v126, %v362
    %364 = vmatprep.mubr.f32.mxu0 0.0
    %365 = vmatmul.mubr.f32.gmra.mxu0 %v142
    %v366 = vpop.f32.mrf.mxu0
    %v367 = vadd.f32 %v122, %v366
    %v368 = vpop.f32.mrf.mxu0
    %v369 = vadd.f32 %v126, %v368
    %370 = vmatprep.mubr.f32.mxu0 0.0
    %371 = vmatmul.mubr.f32.gmra.mxu0 %v145
    %v372 = vpop.f32.mrf.mxu0
    %v373 = vadd.f32 %v122, %v372
    %v374 = vpop.f32.mrf.mxu0
    %v375 = vadd.f32 %v126, %v374
    %376 = vmatprep.mubr.f32.mxu0 0.0
    %377 = vmatmul.mubr.f32.gmra.mxu0 %v148
    %v378 = vpop.f32.mrf.mxu0
    %v379 = vadd.f32 %v122, %v378
    %v380 = vpop.f32.mrf.mxu0
    %v381 = vadd.f32 %v126, %v380
    %382 = vmatprep.mubr.f32.mxu0 0.0
    %383 = vmatmul.mubr.f32.gmra.mxu0 %v151
    %v384 = vpop.f32.mrf.mxu0
    %v385 = vadd.f32 %v122, %v384
    %v386 = vpop.f32.mrf.mxu0
    %v387 = vadd.f32 %v126, %v386
    %388 = vmatprep.mubr.f32.mxu0 0.0
    %389 = vmatmul.mubr.f32.gmra.mxu0 %v154
    %v390 = vpop.f32.mrf.mxu0
    %v391 = vadd.f32 %v122, %v390
    %v392 = vpop.f32.mrf.mxu0
    %v393 = vadd.f32 %v126, %v392
    %394 = vdwg.mxu0
    %v395 = vld [vmem:[#allocation5] sm:$0xff]
    %v396 = vld [vmem:[#allocation5 + $0x8] sm:$0xff]
    %v397 = vld [vmem:[#allocation5 + $0x10] sm:$0xff]
    %v398 = vld [vmem:[#allocation5 + $0x18] sm:$0xff]
    %v399 = vld [vmem:[#allocation5 + $0x20] sm:$0xff]
    %v400 = vld [vmem:[#allocation5 + $0x28] sm:$0xff]
    %v401 = vld [vmem:[#allocation5 + $0x30] sm:$0xff]
    %v402 = vld [vmem:[#allocation5 + $0x38] sm:$0xff]
    %v403 = vld [vmem:[#allocation5 + $0x40] sm:$0xff]
    %v404 = vld [vmem:[#allocation5 + $0x48] sm:$0xff]
    %v405 = vld [vmem:[#allocation5 + $0x50] sm:$0xff]
    %v406 = vld [vmem:[#allocation5 + $0x58] sm:$0xff]
    %v407 = vld [vmem:[#allocation5 + $0x60] sm:$0xff]
    %v408 = vld [vmem:[#allocation5 + $0x68] sm:$0xff]
    %v409 = vld [vmem:[#allocation5 + $0x70] sm:$0xff]
    %v410 = vld [vmem:[#allocation5 + $0x78] sm:$0xff]
    %v411 = vld [vmem:[#allocation5 + $0x80] sm:$0xff]
    %v412 = vld [vmem:[#allocation5 + $0x88] sm:$0xff]
    %v413 = vld [vmem:[#allocation5 + $0x90] sm:$0xff]
    %v414 = vld [vmem:[#allocation5 + $0x98] sm:$0xff]
    %v415 = vld [vmem:[#allocation5 + $0xa0] sm:$0xff]
    %v416 = vld [vmem:[#allocation5 + $0xa8] sm:$0xff]
    %v417 = vld [vmem:[#allocation5 + $0xb0] sm:$0xff]
    %v418 = vld [vmem:[#allocation5 + $0xb8] sm:$0xff]
    %v419 = vld [vmem:[#allocation5 + $0xc0] sm:$0xff]
    %v420 = vld [vmem:[#allocation5 + $0xc8] sm:$0xff]
    %v421 = vld [vmem:[#allocation5 + $0xd0] sm:$0xff]
    %v422 = vld [vmem:[#allocation5 + $0xd8] sm:$0xff]
    %v423 = vld [vmem:[#allocation5 + $0xe0] sm:$0xff]
    %v424 = vld [vmem:[#allocation5 + $0xe8] sm:$0xff]
    %v425 = vld [vmem:[#allocation5 + $0xf0] sm:$0xff]
    %v426 = vld [vmem:[#allocation5 + $0xf8] sm:$0xff]
    %v427 = vld [vmem:[#allocation5 + $0x100] sm:$0xff]
    %v428 = vld [vmem:[#allocation5 + $0x108] sm:$0xff]
    %v429 = vld [vmem:[#allocation5 + $0x110] sm:$0xff]
    %v430 = vld [vmem:[#allocation5 + $0x118] sm:$0xff]
    %v431 = vld [vmem:[#allocation5 + $0x120] sm:$0xff]
    %v432 = vld [vmem:[#allocation5 + $0x128] sm:$0xff]
    %v433 = vld [vmem:[#allocation5 + $0x130] sm:$0xff]
    %v434 = vld [vmem:[#allocation5 + $0x138] sm:$0xff]
    %v435 = vld [vmem:[#allocation5 + $0x140] sm:$0xff]
    %v436 = vld [vmem:[#allocation5 + $0x148] sm:$0xff]
    %v437 = vld [vmem:[#allocation5 + $0x150] sm:$0xff]
    %v438 = vld [vmem:[#allocation5 + $0x158] sm:$0xff]
    %v439 = vld [vmem:[#allocation5 + $0x160] sm:$0xff]
    %v440 = vld [vmem:[#allocation5 + $0x168] sm:$0xff]
    %v441 = vld [vmem:[#allocation5 + $0x170] sm:$0xff]
    %v442 = vld [vmem:[#allocation5 + $0x178] sm:$0xff]
    %v443 = vld [vmem:[#allocation5 + $0x180] sm:$0xff]
    %v444 = vld [vmem:[#allocation5 + $0x188] sm:$0xff]
    %v445 = vld [vmem:[#allocation5 + $0x190] sm:$0xff]
    %v446 = vld [vmem:[#allocation5 + $0x198] sm:$0xff]
    %v447 = vld [vmem:[#allocation5 + $0x1a0] sm:$0xff]
    %v448 = vld [vmem:[#allocation5 + $0x1a8] sm:$0xff]
    %v449 = vld [vmem:[#allocation5 + $0x1b0] sm:$0xff]
    %v450 = vld [vmem:[#allocation5 + $0x1b8] sm:$0xff]
    %v451 = vld [vmem:[#allocation5 + $0x1c0] sm:$0xff]
    %v452 = vld [vmem:[#allocation5 + $0x1c8] sm:$0xff]
    %v453 = vld [vmem:[#allocation5 + $0x1d0] sm:$0xff]
    %v454 = vld [vmem:[#allocation5 + $0x1d8] sm:$0xff]
    %v455 = vld [vmem:[#allocation5 + $0x1e0] sm:$0xff]
    %v456 = vld [vmem:[#allocation5 + $0x1e8] sm:$0xff]
    %v457 = vld [vmem:[#allocation5 + $0x1f0] sm:$0xff]
    %v458 = vld [vmem:[#allocation5 + $0x1f8] sm:$0xff]
    %459 = vmatprep.subr.mxu0 %v456
    %460 = vmatpush1.msra.mxu0 %v455
    %461 = vmatprep.subr.mxu0 %v452
    %462 = vmatpush1.msra.mxu0 %v451
    %463 = vmatprep.subr.mxu0 %v448
    %464 = vmatpush1.msra.mxu0 %v447
    %465 = vmatprep.subr.mxu0 %v444
    %466 = vmatpush1.msra.mxu0 %v443
    %467 = vmatprep.subr.mxu0 %v440
    %468 = vmatpush1.msra.mxu0 %v439
    %469 = vmatprep.subr.mxu0 %v436
    %470 = vmatpush1.msra.mxu0 %v435
    %471 = vmatprep.subr.mxu0 %v432
    %472 = vmatpush1.msra.mxu0 %v431
    %473 = vmatprep.subr.mxu0 %v428
    %474 = vmatpush1.msra.mxu0 %v427
    %475 = vmatprep.subr.mxu0 %v424
    %476 = vmatpush1.msra.mxu0 %v423
    %477 = vmatprep.subr.mxu0 %v420
    %478 = vmatpush1.msra.mxu0 %v419
    %479 = vmatprep.subr.mxu0 %v416
    %480 = vmatpush1.msra.mxu0 %v415
    %481 = vmatprep.subr.mxu0 %v412
    %482 = vmatpush1.msra.mxu0 %v411
    %483 = vmatprep.subr.mxu0 %v408
    %484 = vmatpush1.msra.mxu0 %v407
    %485 = vmatprep.subr.mxu0 %v404
    %486 = vmatpush1.msra.mxu0 %v403
    %487 = vmatprep.subr.mxu0 %v400
    %488 = vmatpush1.msra.mxu0 %v399
    %489 = vmatprep.subr.mxu0 %v396
    %490 = vmatpush1.msra.mxu0 %v395
    %491 = vmatprep.subr.mxu0 0.0
    %492 = vmatpush2.msra.mxu0 0.0
    %493 = vmatprep.subr.mxu0 0.0
    %494 = vmatpush2.msra.mxu0 0.0
    %495 = vmatprep.subr.mxu0 0.0
    %496 = vmatpush2.msra.mxu0 0.0
    %497 = vmatprep.subr.mxu0 0.0
    %498 = vmatpush2.msra.mxu0 0.0
    %499 = vmatprep.subr.mxu0 0.0
    %500 = vmatpush2.msra.mxu0 0.0
    %501 = vmatprep.subr.mxu0 0.0
    %502 = vmatpush2.msra.mxu0 0.0
    %503 = vmatprep.subr.mxu0 0.0
    %504 = vmatpush2.msra.mxu0 0.0
    %505 = vmatprep.subr.mxu0 0.0
    %506 = vmatpush2.msra.mxu0 0.0
    %507 = vmatprep.subr.mxu0 0.0
    %508 = vmatpush2.msra.mxu0 0.0
    %509 = vmatprep.subr.mxu0 0.0
    %510 = vmatpush2.msra.mxu0 0.0
    %511 = vmatprep.subr.mxu0 0.0
    %512 = vmatpush2.msra.mxu0 0.0
    %513 = vmatprep.subr.mxu0 0.0
    %514 = vmatpush2.msra.mxu0 0.0
    %515 = vmatprep.subr.mxu0 0.0
    %516 = vmatpush2.msra.mxu0 0.0
    %517 = vmatprep.subr.mxu0 0.0
    %518 = vmatpush2.msra.mxu0 0.0
    %519 = vmatprep.subr.mxu0 0.0
    %520 = vmatpush2.msra.mxu0 0.0
    %521 = vmatprep.subr.mxu0 0.0
    %522 = vmatpush2.msra.mxu0 0.0
    %523 = vmatprep.mubr.f32.mxu0 0.0
    %524 = vmatmul.mubr.f32.gmra.mxu0 0.0
    %v525 = vpop.f32.mrf.mxu0
    %v526 = vadd.f32 0.0, %v525
    %v527 = vpop.f32.mrf.mxu0
    %v528 = vadd.f32 0.0, %v527
    %529 = vdwg.mxu0
    %530 = vmatprep.subr.mxu0 %v458
    %531 = vmatpush1.msra.mxu0 %v457
    %532 = vmatprep.subr.mxu0 %v454
    %533 = vmatpush1.msra.mxu0 %v453
    %534 = vmatprep.subr.mxu0 %v450
    %535 = vmatpush1.msra.mxu0 %v449
    %536 = vmatprep.subr.mxu0 %v446
    %537 = vmatpush1.msra.mxu0 %v445
    %538 = vmatprep.subr.mxu0 %v442
    %539 = vmatpush1.msra.mxu0 %v441
    %540 = vmatprep.subr.mxu0 %v438
    %541 = vmatpush1.msra.mxu0 %v437
    %542 = vmatprep.subr.mxu0 %v434
    %543 = vmatpush1.msra.mxu0 %v433
    %544 = vmatprep.subr.mxu0 %v430
    %545 = vmatpush1.msra.mxu0 %v429
    %546 = vmatprep.subr.mxu0 %v426
    %547 = vmatpush1.msra.mxu0 %v425
    %548 = vmatprep.subr.mxu0 %v422
    %549 = vmatpush1.msra.mxu0 %v421
    %550 = vmatprep.subr.mxu0 %v418
    %551 = vmatpush1.msra.mxu0 %v417
    %552 = vmatprep.subr.mxu0 %v414
    %553 = vmatpush1.msra.mxu0 %v413
    %554 = vmatprep.subr.mxu0 %v410
    %555 = vmatpush1.msra.mxu0 %v409
    %556 = vmatprep.subr.mxu0 %v406
    %557 = vmatpush1.msra.mxu0 %v405
    %558 = vmatprep.subr.mxu0 %v402
    %559 = vmatpush1.msra.mxu0 %v401
    %560 = vmatprep.subr.mxu0 %v398
    %561 = vmatpush1.msra.mxu0 %v397
    %562 = vmatprep.subr.mxu0 0.0
    %563 = vmatpush2.msra.mxu0 0.0
    %564 = vmatprep.subr.mxu0 0.0
    %565 = vmatpush2.msra.mxu0 0.0
    %566 = vmatprep.subr.mxu0 0.0
    %567 = vmatpush2.msra.mxu0 0.0
    %568 = vmatprep.subr.mxu0 0.0
    %569 = vmatpush2.msra.mxu0 0.0
    %570 = vmatprep.subr.mxu0 0.0
    %571 = vmatpush2.msra.mxu0 0.0
    %572 = vmatprep.subr.mxu0 0.0
    %573 = vmatpush2.msra.mxu0 0.0
    %574 = vmatprep.subr.mxu0 0.0
    %575 = vmatpush2.msra.mxu0 0.0
    %576 = vmatprep.subr.mxu0 0.0
    %577 = vmatpush2.msra.mxu0 0.0
    %578 = vmatprep.subr.mxu0 0.0
    %579 = vmatpush2.msra.mxu0 0.0
    %580 = vmatprep.subr.mxu0 0.0
    %581 = vmatpush2.msra.mxu0 0.0
    %582 = vmatprep.subr.mxu0 0.0
    %583 = vmatpush2.msra.mxu0 0.0
    %584 = vmatprep.subr.mxu0 0.0
    %585 = vmatpush2.msra.mxu0 0.0
    %586 = vmatprep.subr.mxu0 0.0
    %587 = vmatpush2.msra.mxu0 0.0
    %588 = vmatprep.subr.mxu0 0.0
    %589 = vmatpush2.msra.mxu0 0.0
    %590 = vmatprep.subr.mxu0 0.0
    %591 = vmatpush2.msra.mxu0 0.0
    %592 = vmatprep.subr.mxu0 0.0
    %593 = vmatpush2.msra.mxu0 0.0
    %594 = vmatprep.mubr.f32.mxu0 0.0
    %595 = vmatmul.mubr.f32.gmra.mxu0 0.0
    %v596 = vpop.f32.mrf.mxu0
    %v597 = vadd.f32 0.0, %v596
    %v598 = vpop.f32.mrf.mxu0
    %v599 = vadd.f32 0.0, %v598
    %600 = vdwg.mxu0
    %v601 = vadd.f32 %v236, %v526
    %v602 = vadd.f32 %v238, %v528
    %v603 = vadd.f32 %v349, %v597
    %v604 = vadd.f32 %v351, %v599
    %v605 = vxor.u32 %v601, 2147483648
    %v606 = vmul.f32 %v605, 1.442695
    %v607 = vpow.pop %v606
    %v608 = vadd.f32 %v607, 1.0
    %v609 = vrcp.pop %v608
    %v610 = vmul.f32 1.0, %v609
    %v611 = vxor.u32 %v602, 2147483648
    %v612 = vmul.f32 %v611, 1.442695
    %v613 = vpow.pop %v612
    %v614 = vadd.f32 %v613, 1.0
    %v615 = vrcp.pop %v614
    %v616 = vmul.f32 1.0, %v615
    %v617 = vtanh.pop %v603
    %v618 = vxor.u32 %v604, 2147483648
    %v619 = vmul.f32 %v618, 1.442695
    %v620 = vpow.pop %v619
    %v621 = vadd.f32 %v620, 1.0
    %v622 = vrcp.pop %v621
    %v623 = vmul.f32 1.0, %v622
    %v624 = vmul.f32 %v616, 0.0
    %v625 = vmul.f32 %v610, %v617
    %v626 = vadd.f32 %v624, %v625
    %v627 = vtanh.pop %v626
    %v628 = vmul.f32 %v623, %v627
    %629 = vmatprep.subr.mxu0 %v456
    %630 = vmatpush1.msra.mxu0 %v455
    %631 = vmatprep.subr.mxu0 %v452
    %632 = vmatpush1.msra.mxu0 %v451
    %633 = vmatprep.subr.mxu0 %v448
    %634 = vmatpush1.msra.mxu0 %v447
    %635 = vmatprep.subr.mxu0 %v444
    %636 = vmatpush1.msra.mxu0 %v443
    %637 = vmatprep.subr.mxu0 %v440
    %638 = vmatpush1.msra.mxu0 %v439
    %639 = vmatprep.subr.mxu0 %v436
    %640 = vmatpush1.msra.mxu0 %v435
    %641 = vmatprep.subr.mxu0 %v432
    %642 = vmatpush1.msra.mxu0 %v431
    %643 = vmatprep.subr.mxu0 %v428
    %644 = vmatpush1.msra.mxu0 %v427
    %645 = vmatprep.subr.mxu0 %v424
    %646 = vmatpush1.msra.mxu0 %v423
    %647 = vmatprep.subr.mxu0 %v420
    %648 = vmatpush1.msra.mxu0 %v419
    %649 = vmatprep.subr.mxu0 %v416
    %650 = vmatpush1.msra.mxu0 %v415
    %651 = vmatprep.subr.mxu0 %v412
    %652 = vmatpush1.msra.mxu0 %v411
    %653 = vmatprep.subr.mxu0 %v408
    %654 = vmatpush1.msra.mxu0 %v407
    %655 = vmatprep.subr.mxu0 %v404
    %656 = vmatpush1.msra.mxu0 %v403
    %657 = vmatprep.subr.mxu0 %v400
    %658 = vmatpush1.msra.mxu0 %v399
    %659 = vmatprep.subr.mxu0 %v396
    %660 = vmatpush1.msra.mxu0 %v395
    %661 = vmatprep.subr.mxu0 0.0
    %662 = vmatpush2.msra.mxu0 0.0
    %663 = vmatprep.subr.mxu0 0.0
    %664 = vmatpush2.msra.mxu0 0.0
    %665 = vmatprep.subr.mxu0 0.0
    %666 = vmatpush2.msra.mxu0 0.0
    %667 = vmatprep.subr.mxu0 0.0
    %668 = vmatpush2.msra.mxu0 0.0
    %669 = vmatprep.subr.mxu0 0.0
    %670 = vmatpush2.msra.mxu0 0.0
    %671 = vmatprep.subr.mxu0 0.0
    %672 = vmatpush2.msra.mxu0 0.0
    %673 = vmatprep.subr.mxu0 0.0
    %674 = vmatpush2.msra.mxu0 0.0
    %675 = vmatprep.subr.mxu0 0.0
    %676 = vmatpush2.msra.mxu0 0.0
    %677 = vmatprep.subr.mxu0 0.0
    %678 = vmatpush2.msra.mxu0 0.0
    %679 = vmatprep.subr.mxu0 0.0
    %680 = vmatpush2.msra.mxu0 0.0
    %681 = vmatprep.subr.mxu0 0.0
    %682 = vmatpush2.msra.mxu0 0.0
    %683 = vmatprep.subr.mxu0 0.0
    %684 = vmatpush2.msra.mxu0 0.0
    %685 = vmatprep.subr.mxu0 0.0
    %686 = vmatpush2.msra.mxu0 0.0
    %687 = vmatprep.subr.mxu0 0.0
    %688 = vmatpush2.msra.mxu0 0.0
    %689 = vmatprep.subr.mxu0 0.0
    %690 = vmatpush2.msra.mxu0 0.0
    %691 = vmatprep.subr.mxu0 0.0
    %692 = vmatpush2.msra.mxu0 0.0
    %693 = vmatprep.mubr.f32.mxu0 0.0
    %694 = vmatmul.mubr.f32.gmra.mxu0 %v628
    %v695 = vpop.f32.mrf.mxu0
    %v696 = vadd.f32 0.0, %v695
    %v697 = vpop.f32.mrf.mxu0
    %v698 = vadd.f32 0.0, %v697
    %699 = vdwg.mxu0
    %700 = vmatprep.subr.mxu0 %v458
    %701 = vmatpush1.msra.mxu0 %v457
    %702 = vmatprep.subr.mxu0 %v454
    %703 = vmatpush1.msra.mxu0 %v453
    %704 = vmatprep.subr.mxu0 %v450
    %705 = vmatpush1.msra.mxu0 %v449
    %706 = vmatprep.subr.mxu0 %v446
    %707 = vmatpush1.msra.mxu0 %v445
    %708 = vmatprep.subr.mxu0 %v442
    %709 = vmatpush1.msra.mxu0 %v441
    %710 = vmatprep.subr.mxu0 %v438
    %711 = vmatpush1.msra.mxu0 %v437
    %712 = vmatprep.subr.mxu0 %v434
    %713 = vmatpush1.msra.mxu0 %v433
    %714 = vmatprep.subr.mxu0 %v430
    %715 = vmatpush1.msra.mxu0 %v429
    %716 = vmatprep.subr.mxu0 %v426
    %717 = vmatpush1.msra.mxu0 %v425
    %718 = vmatprep.subr.mxu0 %v422
    %719 = vmatpush1.msra.mxu0 %v421
    %720 = vmatprep.subr.mxu0 %v418
    %721 = vmatpush1.msra.mxu0 %v417
    %722 = vmatprep.subr.mxu0 %v414
    %723 = vmatpush1.msra.mxu0 %v413
    %724 = vmatprep.subr.mxu0 %v410
    %725 = vmatpush1.msra.mxu0 %v409
    %726 = vmatprep.subr.mxu0 %v406
    %727 = vmatpush1.msra.mxu0 %v405
    %728 = vmatprep.subr.mxu0 %v402
    %729 = vmatpush1.msra.mxu0 %v401
    %730 = vmatprep.subr.mxu0 %v398
    %731 = vmatpush1.msra.mxu0 %v397
    %732 = vmatprep.subr.mxu0 0.0
    %733 = vmatpush2.msra.mxu0 0.0
    %734 = vmatprep.subr.mxu0 0.0
    %735 = vmatpush2.msra.mxu0 0.0
    %736 = vmatprep.subr.mxu0 0.0
    %737 = vmatpush2.msra.mxu0 0.0
    %738 = vmatprep.subr.mxu0 0.0
    %739 = vmatpush2.msra.mxu0 0.0
    %740 = vmatprep.subr.mxu0 0.0
    %741 = vmatpush2.msra.mxu0 0.0
    %742 = vmatprep.subr.mxu0 0.0
    %743 = vmatpush2.msra.mxu0 0.0
    %744 = vmatprep.subr.mxu0 0.0
    %745 = vmatpush2.msra.mxu0 0.0
    %746 = vmatprep.subr.mxu0 0.0
    %747 = vmatpush2.msra.mxu0 0.0
    %748 = vmatprep.subr.mxu0 0.0
    %749 = vmatpush2.msra.mxu0 0.0
    %750 = vmatprep.subr.mxu0 0.0
    %751 = vmatpush2.msra.mxu0 0.0
    %752 = vmatprep.subr.mxu0 0.0
    %753 = vmatpush2.msra.mxu0 0.0
    %754 = vmatprep.subr.mxu0 0.0
    %755 = vmatpush2.msra.mxu0 0.0
    %756 = vmatprep.subr.mxu0 0.0
    %757 = vmatpush2.msra.mxu0 0.0
    %758 = vmatprep.subr.mxu0 0.0
    %759 = vmatpush2.msra.mxu0 0.0
    %760 = vmatprep.subr.mxu0 0.0
    %761 = vmatpush2.msra.mxu0 0.0
    %762 = vmatprep.subr.mxu0 0.0
    %763 = vmatpush2.msra.mxu0 0.0
    %764 = vmatprep.mubr.f32.mxu0 0.0
    %765 = vmatmul.mubr.f32.gmra.mxu0 %v628
    %v766 = vpop.f32.mrf.mxu0
    %v767 = vadd.f32 0.0, %v766
    %v768 = vpop.f32.mrf.mxu0
    %v769 = vadd.f32 0.0, %v768
    %770 = vdwg.mxu0
    %v771 = vadd.f32 %v242, %v696
    %v772 = vadd.f32 %v244, %v698
    %v773 = vadd.f32 %v355, %v767
    %v774 = vadd.f32 %v357, %v769
    %v775 = vxor.u32 %v771, 2147483648
    %v776 = vmul.f32 %v775, 1.442695
    %v777 = vpow.pop %v776
    %v778 = vadd.f32 %v777, 1.0
    %v779 = vrcp.pop %v778
    %v780 = vmul.f32 1.0, %v779
    %v781 = vxor.u32 %v772, 2147483648
    %v782 = vmul.f32 %v781, 1.442695
    %v783 = vpow.pop %v782
    %v784 = vadd.f32 %v783, 1.0
    %v785 = vrcp.pop %v784
    %v786 = vmul.f32 1.0, %v785
    %v787 = vtanh.pop %v773
    %v788 = vxor.u32 %v774, 2147483648
    %v789 = vmul.f32 %v788, 1.442695
    %v790 = vpow.pop %v789
    %v791 = vadd.f32 %v790, 1.0
    %v792 = vrcp.pop %v791
    %v793 = vmul.f32 1.0, %v792
    %v794 = vmul.f32 %v786, %v626
    %v795 = vmul.f32 %v780, %v787
    %v796 = vadd.f32 %v794, %v795
    %v797 = vtanh.pop %v796
    %v798 = vmul.f32 %v793, %v797
    %799 = vmatprep.subr.mxu0 %v456
    %800 = vmatpush1.msra.mxu0 %v455
    %801 = vmatprep.subr.mxu0 %v452
    %802 = vmatpush1.msra.mxu0 %v451
    %803 = vmatprep.subr.mxu0 %v448
    %804 = vmatpush1.msra.mxu0 %v447
    %805 = vmatprep.subr.mxu0 %v444
    %806 = vmatpush1.msra.mxu0 %v443
    %807 = vmatprep.subr.mxu0 %v440
    %808 = vmatpush1.msra.mxu0 %v439
    %809 = vmatprep.subr.mxu0 %v436
    %810 = vmatpush1.msra.mxu0 %v435
    %811 = vmatprep.subr.mxu0 %v432
    %812 = vmatpush1.msra.mxu0 %v431
    %813 = vmatprep.subr.mxu0 %v428
    %814 = vmatpush1.msra.mxu0 %v427
    %815 = vmatprep.subr.mxu0 %v424
    %816 = vmatpush1.msra.mxu0 %v423
    %817 = vmatprep.subr.mxu0 %v420
    %818 = vmatpush1.msra.mxu0 %v419
    %819 = vmatprep.subr.mxu0 %v416
    %820 = vmatpush1.msra.mxu0 %v415
    %821 = vmatprep.subr.mxu0 %v412
    %822 = vmatpush1.msra.mxu0 %v411
    %823 = vmatprep.subr.mxu0 %v408
    %824 = vmatpush1.msra.mxu0 %v407
    %825 = vmatprep.subr.mxu0 %v404
    %826 = vmatpush1.msra.mxu0 %v403
    %827 = vmatprep.subr.mxu0 %v400
    %828 = vmatpush1.msra.mxu0 %v399
    %829 = vmatprep.subr.mxu0 %v396
    %830 = vmatpush1.msra.mxu0 %v395
    %831 = vmatprep.subr.mxu0 0.0
    %832 = vmatpush2.msra.mxu0 0.0
    %833 = vmatprep.subr.mxu0 0.0
    %834 = vmatpush2.msra.mxu0 0.0
    %835 = vmatprep.subr.mxu0 0.0
    %836 = vmatpush2.msra.mxu0 0.0
    %837 = vmatprep.subr.mxu0 0.0
    %838 = vmatpush2.msra.mxu0 0.0
    %839 = vmatprep.subr.mxu0 0.0
    %840 = vmatpush2.msra.mxu0 0.0
    %841 = vmatprep.subr.mxu0 0.0
    %842 = vmatpush2.msra.mxu0 0.0
    %843 = vmatprep.subr.mxu0 0.0
    %844 = vmatpush2.msra.mxu0 0.0
    %845 = vmatprep.subr.mxu0 0.0
    %846 = vmatpush2.msra.mxu0 0.0
    %847 = vmatprep.subr.mxu0 0.0
    %848 = vmatpush2.msra.mxu0 0.0
    %849 = vmatprep.subr.mxu0 0.0
    %850 = vmatpush2.msra.mxu0 0.0
    %851 = vmatprep.subr.mxu0 0.0
    %852 = vmatpush2.msra.mxu0 0.0
    %853 = vmatprep.subr.mxu0 0.0
    %854 = vmatpush2.msra.mxu0 0.0
    %855 = vmatprep.subr.mxu0 0.0
    %856 = vmatpush2.msra.mxu0 0.0
    %857 = vmatprep.subr.mxu0 0.0
    %858 = vmatpush2.msra.mxu0 0.0
    %859 = vmatprep.subr.mxu0 0.0
    %860 = vmatpush2.msra.mxu0 0.0
    %861 = vmatprep.subr.mxu0 0.0
    %862 = vmatpush2.msra.mxu0 0.0
    %863 = vmatprep.mubr.f32.mxu0 0.0
    %864 = vmatmul.mubr.f32.gmra.mxu0 %v798
    %v865 = vpop.f32.mrf.mxu0
    %v866 = vadd.f32 0.0, %v865
    %v867 = vpop.f32.mrf.mxu0
    %v868 = vadd.f32 0.0, %v867
    %869 = vdwg.mxu0
    %870 = vmatprep.subr.mxu0 %v458
    %871 = vmatpush1.msra.mxu0 %v457
    %872 = vmatprep.subr.mxu0 %v454
    %873 = vmatpush1.msra.mxu0 %v453
    %874 = vmatprep.subr.mxu0 %v450
    %875 = vmatpush1.msra.mxu0 %v449
    %876 = vmatprep.subr.mxu0 %v446
    %877 = vmatpush1.msra.mxu0 %v445
    %878 = vmatprep.subr.mxu0 %v442
    %879 = vmatpush1.msra.mxu0 %v441
    %880 = vmatprep.subr.mxu0 %v438
    %881 = vmatpush1.msra.mxu0 %v437
    %882 = vmatprep.subr.mxu0 %v434
    %883 = vmatpush1.msra.mxu0 %v433
    %884 = vmatprep.subr.mxu0 %v430
    %885 = vmatpush1.msra.mxu0 %v429
    %886 = vmatprep.subr.mxu0 %v426
    %887 = vmatpush1.msra.mxu0 %v425
    %888 = vmatprep.subr.mxu0 %v422
    %889 = vmatpush1.msra.mxu0 %v421
    %890 = vmatprep.subr.mxu0 %v418
    %891 = vmatpush1.msra.mxu0 %v417
    %892 = vmatprep.subr.mxu0 %v414
    %893 = vmatpush1.msra.mxu0 %v413
    %894 = vmatprep.subr.mxu0 %v410
    %895 = vmatpush1.msra.mxu0 %v409
    %896 = vmatprep.subr.mxu0 %v406
    %897 = vmatpush1.msra.mxu0 %v405
    %898 = vmatprep.subr.mxu0 %v402
    %899 = vmatpush1.msra.mxu0 %v401
    %900 = vmatprep.subr.mxu0 %v398
    %901 = vmatpush1.msra.mxu0 %v397
    %902 = vmatprep.subr.mxu0 0.0
    %903 = vmatpush2.msra.mxu0 0.0
    %904 = vmatprep.subr.mxu0 0.0
    %905 = vmatpush2.msra.mxu0 0.0
    %906 = vmatprep.subr.mxu0 0.0
    %907 = vmatpush2.msra.mxu0 0.0
    %908 = vmatprep.subr.mxu0 0.0
    %909 = vmatpush2.msra.mxu0 0.0
    %910 = vmatprep.subr.mxu0 0.0
    %911 = vmatpush2.msra.mxu0 0.0
    %912 = vmatprep.subr.mxu0 0.0
    %913 = vmatpush2.msra.mxu0 0.0
    %914 = vmatprep.subr.mxu0 0.0
    %915 = vmatpush2.msra.mxu0 0.0
    %916 = vmatprep.subr.mxu0 0.0
    %917 = vmatpush2.msra.mxu0 0.0
    %918 = vmatprep.subr.mxu0 0.0
    %919 = vmatpush2.msra.mxu0 0.0
    %920 = vmatprep.subr.mxu0 0.0
    %921 = vmatpush2.msra.mxu0 0.0
    %922 = vmatprep.subr.mxu0 0.0
    %923 = vmatpush2.msra.mxu0 0.0
    %924 = vmatprep.subr.mxu0 0.0
    %925 = vmatpush2.msra.mxu0 0.0
    %926 = vmatprep.subr.mxu0 0.0
    %927 = vmatpush2.msra.mxu0 0.0
    %928 = vmatprep.subr.mxu0 0.0
    %929 = vmatpush2.msra.mxu0 0.0
    %930 = vmatprep.subr.mxu0 0.0
    %931 = vmatpush2.msra.mxu0 0.0
    %932 = vmatprep.subr.mxu0 0.0
    %933 = vmatpush2.msra.mxu0 0.0
    %934 = vmatprep.mubr.f32.mxu0 0.0
    %935 = vmatmul.mubr.f32.gmra.mxu0 %v798
    %v936 = vpop.f32.mrf.mxu0
    %v937 = vadd.f32 0.0, %v936
    %v938 = vpop.f32.mrf.mxu0
    %v939 = vadd.f32 0.0, %v938
    %940 = vdwg.mxu0
    %v941 = vadd.f32 %v248, %v866
    %v942 = vadd.f32 %v250, %v868
    %v943 = vadd.f32 %v361, %v937
    %v944 = vadd.f32 %v363, %v939
    %v945 = vxor.u32 %v941, 2147483648
    %v946 = vmul.f32 %v945, 1.442695
    %v947 = vpow.pop %v946
    %v948 = vadd.f32 %v947, 1.0
    %v949 = vrcp.pop %v948
    %v950 = vmul.f32 1.0, %v949
    %v951 = vxor.u32 %v942, 2147483648
    %v952 = vmul.f32 %v951, 1.442695
    %v953 = vpow.pop %v952
    %v954 = vadd.f32 %v953, 1.0
    %v955 = vrcp.pop %v954
    %v956 = vmul.f32 1.0, %v955
    %v957 = vtanh.pop %v943
    %v958 = vxor.u32 %v944, 2147483648
    %v959 = vmul.f32 %v958, 1.442695
    %v960 = vpow.pop %v959
    %v961 = vadd.f32 %v960, 1.0
    %v962 = vrcp.pop %v961
    %v963 = vmul.f32 1.0, %v962
    %v964 = vmul.f32 %v956, %v796
    %v965 = vmul.f32 %v950, %v957
    %v966 = vadd.f32 %v964, %v965
    %v967 = vtanh.pop %v966
    %v968 = vmul.f32 %v963, %v967
    %969 = vmatprep.subr.mxu0 %v456
    %970 = vmatpush1.msra.mxu0 %v455
    %971 = vmatprep.subr.mxu0 %v452
    %972 = vmatpush1.msra.mxu0 %v451
    %973 = vmatprep.subr.mxu0 %v448
    %974 = vmatpush1.msra.mxu0 %v447
    %975 = vmatprep.subr.mxu0 %v444
    %976 = vmatpush1.msra.mxu0 %v443
    %977 = vmatprep.subr.mxu0 %v440
    %978 = vmatpush1.msra.mxu0 %v439
    %979 = vmatprep.subr.mxu0 %v436
    %980 = vmatpush1.msra.mxu0 %v435
    %981 = vmatprep.subr.mxu0 %v432
    %982 = vmatpush1.msra.mxu0 %v431
    %983 = vmatprep.subr.mxu0 %v428
    %984 = vmatpush1.msra.mxu0 %v427
    %985 = vmatprep.subr.mxu0 %v424
    %986 = vmatpush1.msra.mxu0 %v423
    %987 = vmatprep.subr.mxu0 %v420
    %988 = vmatpush1.msra.mxu0 %v419
    %989 = vmatprep.subr.mxu0 %v416
    %990 = vmatpush1.msra.mxu0 %v415
    %991 = vmatprep.subr.mxu0 %v412
    %992 = vmatpush1.msra.mxu0 %v411
    %993 = vmatprep.subr.mxu0 %v408
    %994 = vmatpush1.msra.mxu0 %v407
    %995 = vmatprep.subr.mxu0 %v404
    %996 = vmatpush1.msra.mxu0 %v403
    %997 = vmatprep.subr.mxu0 %v400
    %998 = vmatpush1.msra.mxu0 %v399
    %999 = vmatprep.subr.mxu0 %v396
    %1000 = vmatpush1.msra.mxu0 %v395
    %1001 = vmatprep.subr.mxu0 0.0
    %1002 = vmatpush2.msra.mxu0 0.0
    %1003 = vmatprep.subr.mxu0 0.0
    %1004 = vmatpush2.msra.mxu0 0.0
    %1005 = vmatprep.subr.mxu0 0.0
    %1006 = vmatpush2.msra.mxu0 0.0
    %1007 = vmatprep.subr.mxu0 0.0
    %1008 = vmatpush2.msra.mxu0 0.0
    %1009 = vmatprep.subr.mxu0 0.0
    %1010 = vmatpush2.msra.mxu0 0.0
    %1011 = vmatprep.subr.mxu0 0.0
    %1012 = vmatpush2.msra.mxu0 0.0
    %1013 = vmatprep.subr.mxu0 0.0
    %1014 = vmatpush2.msra.mxu0 0.0
    %1015 = vmatprep.subr.mxu0 0.0
    %1016 = vmatpush2.msra.mxu0 0.0
    %1017 = vmatprep.subr.mxu0 0.0
    %1018 = vmatpush2.msra.mxu0 0.0
    %1019 = vmatprep.subr.mxu0 0.0
    %1020 = vmatpush2.msra.mxu0 0.0
    %1021 = vmatprep.subr.mxu0 0.0
    %1022 = vmatpush2.msra.mxu0 0.0
    %1023 = vmatprep.subr.mxu0 0.0
    %1024 = vmatpush2.msra.mxu0 0.0
    %1025 = vmatprep.subr.mxu0 0.0
    %1026 = vmatpush2.msra.mxu0 0.0
    %1027 = vmatprep.subr.mxu0 0.0
    %1028 = vmatpush2.msra.mxu0 0.0
    %1029 = vmatprep.subr.mxu0 0.0
    %1030 = vmatpush2.msra.mxu0 0.0
    %1031 = vmatprep.subr.mxu0 0.0
    %1032 = vmatpush2.msra.mxu0 0.0
    %1033 = vmatprep.mubr.f32.mxu0 0.0
    %1034 = vmatmul.mubr.f32.gmra.mxu0 %v968
    %v1035 = vpop.f32.mrf.mxu0
    %v1036 = vadd.f32 0.0, %v1035
    %v1037 = vpop.f32.mrf.mxu0
    %v1038 = vadd.f32 0.0, %v1037
    %1039 = vdwg.mxu0
    %1040 = vmatprep.subr.mxu0 %v458
    %1041 = vmatpush1.msra.mxu0 %v457
    %1042 = vmatprep.subr.mxu0 %v454
    %1043 = vmatpush1.msra.mxu0 %v453
    %1044 = vmatprep.subr.mxu0 %v450
    %1045 = vmatpush1.msra.mxu0 %v449
    %1046 = vmatprep.subr.mxu0 %v446
    %1047 = vmatpush1.msra.mxu0 %v445
    %1048 = vmatprep.subr.mxu0 %v442
    %1049 = vmatpush1.msra.mxu0 %v441
    %1050 = vmatprep.subr.mxu0 %v438
    %1051 = vmatpush1.msra.mxu0 %v437
    %1052 = vmatprep.subr.mxu0 %v434
    %1053 = vmatpush1.msra.mxu0 %v433
    %1054 = vmatprep.subr.mxu0 %v430
    %1055 = vmatpush1.msra.mxu0 %v429
    %1056 = vmatprep.subr.mxu0 %v426
    %1057 = vmatpush1.msra.mxu0 %v425
    %1058 = vmatprep.subr.mxu0 %v422
    %1059 = vmatpush1.msra.mxu0 %v421
    %1060 = vmatprep.subr.mxu0 %v418
    %1061 = vmatpush1.msra.mxu0 %v417
    %1062 = vmatprep.subr.mxu0 %v414
    %1063 = vmatpush1.msra.mxu0 %v413
    %1064 = vmatprep.subr.mxu0 %v410
    %1065 = vmatpush1.msra.mxu0 %v409
    %1066 = vmatprep.subr.mxu0 %v406
    %1067 = vmatpush1.msra.mxu0 %v405
    %1068 = vmatprep.subr.mxu0 %v402
    %1069 = vmatpush1.msra.mxu0 %v401
    %1070 = vmatprep.subr.mxu0 %v398
    %1071 = vmatpush1.msra.mxu0 %v397
    %1072 = vmatprep.subr.mxu0 0.0
    %1073 = vmatpush2.msra.mxu0 0.0
    %1074 = vmatprep.subr.mxu0 0.0
    %1075 = vmatpush2.msra.mxu0 0.0
    %1076 = vmatprep.subr.mxu0 0.0
    %1077 = vmatpush2.msra.mxu0 0.0
    %1078 = vmatprep.subr.mxu0 0.0
    %1079 = vmatpush2.msra.mxu0 0.0
    %1080 = vmatprep.subr.mxu0 0.0
    %1081 = vmatpush2.msra.mxu0 0.0
    %1082 = vmatprep.subr.mxu0 0.0
    %1083 = vmatpush2.msra.mxu0 0.0
    %1084 = vmatprep.subr.mxu0 0.0
    %1085 = vmatpush2.msra.mxu0 0.0
    %1086 = vmatprep.subr.mxu0 0.0
    %1087 = vmatpush2.msra.mxu0 0.0
    %1088 = vmatprep.subr.mxu0 0.0
    %1089 = vmatpush2.msra.mxu0 0.0
    %1090 = vmatprep.subr.mxu0 0.0
    %1091 = vmatpush2.msra.mxu0 0.0
    %1092 = vmatprep.subr.mxu0 0.0
    %1093 = vmatpush2.msra.mxu0 0.0
    %1094 = vmatprep.subr.mxu0 0.0
    %1095 = vmatpush2.msra.mxu0 0.0
    %1096 = vmatprep.subr.mxu0 0.0
    %1097 = vmatpush2.msra.mxu0 0.0
    %1098 = vmatprep.subr.mxu0 0.0
    %1099 = vmatpush2.msra.mxu0 0.0
    %1100 = vmatprep.subr.mxu0 0.0
    %1101 = vmatpush2.msra.mxu0 0.0
    %1102 = vmatprep.subr.mxu0 0.0
    %1103 = vmatpush2.msra.mxu0 0.0
    %1104 = vmatprep.mubr.f32.mxu0 0.0
    %1105 = vmatmul.mubr.f32.gmra.mxu0 %v968
    %v1106 = vpop.f32.mrf.mxu0
    %v1107 = vadd.f32 0.0, %v1106
    %v1108 = vpop.f32.mrf.mxu0
    %v1109 = vadd.f32 0.0, %v1108
    %1110 = vdwg.mxu0
    %v1111 = vadd.f32 %v254, %v1036
    %v1112 = vadd.f32 %v256, %v1038
    %v1113 = vadd.f32 %v367, %v1107
    %v1114 = vadd.f32 %v369, %v1109
    %v1115 = vxor.u32 %v1111, 2147483648
    %v1116 = vmul.f32 %v1115, 1.442695
    %v1117 = vpow.pop %v1116
    %v1118 = vadd.f32 %v1117, 1.0
    %v1119 = vrcp.pop %v1118
    %v1120 = vmul.f32 1.0, %v1119
    %v1121 = vxor.u32 %v1112, 2147483648
    %v1122 = vmul.f32 %v1121, 1.442695
    %v1123 = vpow.pop %v1122
    %v1124 = vadd.f32 %v1123, 1.0
    %v1125 = vrcp.pop %v1124
    %v1126 = vmul.f32 1.0, %v1125
    %v1127 = vtanh.pop %v1113
    %v1128 = vxor.u32 %v1114, 2147483648
    %v1129 = vmul.f32 %v1128, 1.442695
    %v1130 = vpow.pop %v1129
    %v1131 = vadd.f32 %v1130, 1.0
    %v1132 = vrcp.pop %v1131
    %v1133 = vmul.f32 1.0, %v1132
    %v1134 = vmul.f32 %v1126, %v966
    %v1135 = vmul.f32 %v1120, %v1127
    %v1136 = vadd.f32 %v1134, %v1135
    %v1137 = vtanh.pop %v1136
    %v1138 = vmul.f32 %v1133, %v1137
    %1139 = vmatprep.subr.mxu0 %v456
    %1140 = vmatpush1.msra.mxu0 %v455
    %1141 = vmatprep.subr.mxu0 %v452
    %1142 = vmatpush1.msra.mxu0 %v451
    %1143 = vmatprep.subr.mxu0 %v448
    %1144 = vmatpush1.msra.mxu0 %v447
    %1145 = vmatprep.subr.mxu0 %v444
    %1146 = vmatpush1.msra.mxu0 %v443
    %1147 = vmatprep.subr.mxu0 %v440
    %1148 = vmatpush1.msra.mxu0 %v439
    %1149 = vmatprep.subr.mxu0 %v436
    %1150 = vmatpush1.msra.mxu0 %v435
    %1151 = vmatprep.subr.mxu0 %v432
    %1152 = vmatpush1.msra.mxu0 %v431
    %1153 = vmatprep.subr.mxu0 %v428
    %1154 = vmatpush1.msra.mxu0 %v427
    %1155 = vmatprep.subr.mxu0 %v424
    %1156 = vmatpush1.msra.mxu0 %v423
    %1157 = vmatprep.subr.mxu0 %v420
    %1158 = vmatpush1.msra.mxu0 %v419
    %1159 = vmatprep.subr.mxu0 %v416
    %1160 = vmatpush1.msra.mxu0 %v415
    %1161 = vmatprep.subr.mxu0 %v412
    %1162 = vmatpush1.msra.mxu0 %v411
    %1163 = vmatprep.subr.mxu0 %v408
    %1164 = vmatpush1.msra.mxu0 %v407
    %1165 = vmatprep.subr.mxu0 %v404
    %1166 = vmatpush1.msra.mxu0 %v403
    %1167 = vmatprep.subr.mxu0 %v400
    %1168 = vmatpush1.msra.mxu0 %v399
    %1169 = vmatprep.subr.mxu0 %v396
    %1170 = vmatpush1.msra.mxu0 %v395
    %1171 = vmatprep.subr.mxu0 0.0
    %1172 = vmatpush2.msra.mxu0 0.0
    %1173 = vmatprep.subr.mxu0 0.0
    %1174 = vmatpush2.msra.mxu0 0.0
    %1175 = vmatprep.subr.mxu0 0.0
    %1176 = vmatpush2.msra.mxu0 0.0
    %1177 = vmatprep.subr.mxu0 0.0
    %1178 = vmatpush2.msra.mxu0 0.0
    %1179 = vmatprep.subr.mxu0 0.0
    %1180 = vmatpush2.msra.mxu0 0.0
    %1181 = vmatprep.subr.mxu0 0.0
    %1182 = vmatpush2.msra.mxu0 0.0
    %1183 = vmatprep.subr.mxu0 0.0
    %1184 = vmatpush2.msra.mxu0 0.0
    %1185 = vmatprep.subr.mxu0 0.0
    %1186 = vmatpush2.msra.mxu0 0.0
    %1187 = vmatprep.subr.mxu0 0.0
    %1188 = vmatpush2.msra.mxu0 0.0
    %1189 = vmatprep.subr.mxu0 0.0
    %1190 = vmatpush2.msra.mxu0 0.0
    %1191 = vmatprep.subr.mxu0 0.0
    %1192 = vmatpush2.msra.mxu0 0.0
    %1193 = vmatprep.subr.mxu0 0.0
    %1194 = vmatpush2.msra.mxu0 0.0
    %1195 = vmatprep.subr.mxu0 0.0
    %1196 = vmatpush2.msra.mxu0 0.0
    %1197 = vmatprep.subr.mxu0 0.0
    %1198 = vmatpush2.msra.mxu0 0.0
    %1199 = vmatprep.subr.mxu0 0.0
    %1200 = vmatpush2.msra.mxu0 0.0
    %1201 = vmatprep.subr.mxu0 0.0
    %1202 = vmatpush2.msra.mxu0 0.0
    %1203 = vmatprep.mubr.f32.mxu0 0.0
    %1204 = vmatmul.mubr.f32.gmra.mxu0 %v1138
    %v1205 = vpop.f32.mrf.mxu0
    %v1206 = vadd.f32 0.0, %v1205
    %v1207 = vpop.f32.mrf.mxu0
    %v1208 = vadd.f32 0.0, %v1207
    %1209 = vdwg.mxu0
    %1210 = vmatprep.subr.mxu0 %v458
    %1211 = vmatpush1.msra.mxu0 %v457
    %1212 = vmatprep.subr.mxu0 %v454
    %1213 = vmatpush1.msra.mxu0 %v453
    %1214 = vmatprep.subr.mxu0 %v450
    %1215 = vmatpush1.msra.mxu0 %v449
    %1216 = vmatprep.subr.mxu0 %v446
    %1217 = vmatpush1.msra.mxu0 %v445
    %1218 = vmatprep.subr.mxu0 %v442
    %1219 = vmatpush1.msra.mxu0 %v441
    %1220 = vmatprep.subr.mxu0 %v438
    %1221 = vmatpush1.msra.mxu0 %v437
    %1222 = vmatprep.subr.mxu0 %v434
    %1223 = vmatpush1.msra.mxu0 %v433
    %1224 = vmatprep.subr.mxu0 %v430
    %1225 = vmatpush1.msra.mxu0 %v429
    %1226 = vmatprep.subr.mxu0 %v426
    %1227 = vmatpush1.msra.mxu0 %v425
    %1228 = vmatprep.subr.mxu0 %v422
    %1229 = vmatpush1.msra.mxu0 %v421
    %1230 = vmatprep.subr.mxu0 %v418
    %1231 = vmatpush1.msra.mxu0 %v417
    %1232 = vmatprep.subr.mxu0 %v414
    %1233 = vmatpush1.msra.mxu0 %v413
    %1234 = vmatprep.subr.mxu0 %v410
    %1235 = vmatpush1.msra.mxu0 %v409
    %1236 = vmatprep.subr.mxu0 %v406
    %1237 = vmatpush1.msra.mxu0 %v405
    %1238 = vmatprep.subr.mxu0 %v402
    %1239 = vmatpush1.msra.mxu0 %v401
    %1240 = vmatprep.subr.mxu0 %v398
    %1241 = vmatpush1.msra.mxu0 %v397
    %1242 = vmatprep.subr.mxu0 0.0
    %1243 = vmatpush2.msra.mxu0 0.0
    %1244 = vmatprep.subr.mxu0 0.0
    %1245 = vmatpush2.msra.mxu0 0.0
    %1246 = vmatprep.subr.mxu0 0.0
    %1247 = vmatpush2.msra.mxu0 0.0
    %1248 = vmatprep.subr.mxu0 0.0
    %1249 = vmatpush2.msra.mxu0 0.0
    %1250 = vmatprep.subr.mxu0 0.0
    %1251 = vmatpush2.msra.mxu0 0.0
    %1252 = vmatprep.subr.mxu0 0.0
    %1253 = vmatpush2.msra.mxu0 0.0
    %1254 = vmatprep.subr.mxu0 0.0
    %1255 = vmatpush2.msra.mxu0 0.0
    %1256 = vmatprep.subr.mxu0 0.0
    %1257 = vmatpush2.msra.mxu0 0.0
    %1258 = vmatprep.subr.mxu0 0.0
    %1259 = vmatpush2.msra.mxu0 0.0
    %1260 = vmatprep.subr.mxu0 0.0
    %1261 = vmatpush2.msra.mxu0 0.0
    %1262 = vmatprep.subr.mxu0 0.0
    %1263 = vmatpush2.msra.mxu0 0.0
    %1264 = vmatprep.subr.mxu0 0.0
    %1265 = vmatpush2.msra.mxu0 0.0
    %1266 = vmatprep.subr.mxu0 0.0
    %1267 = vmatpush2.msra.mxu0 0.0
    %1268 = vmatprep.subr.mxu0 0.0
    %1269 = vmatpush2.msra.mxu0 0.0
    %1270 = vmatprep.subr.mxu0 0.0
    %1271 = vmatpush2.msra.mxu0 0.0
    %1272 = vmatprep.subr.mxu0 0.0
    %1273 = vmatpush2.msra.mxu0 0.0
    %1274 = vmatprep.mubr.f32.mxu0 0.0
    %1275 = vmatmul.mubr.f32.gmra.mxu0 %v1138
    %v1276 = vpop.f32.mrf.mxu0
    %v1277 = vadd.f32 0.0, %v1276
    %v1278 = vpop.f32.mrf.mxu0
    %v1279 = vadd.f32 0.0, %v1278
    %1280 = vdwg.mxu0
    %v1281 = vadd.f32 %v260, %v1206
    %v1282 = vadd.f32 %v262, %v1208
    %v1283 = vadd.f32 %v373, %v1277
    %v1284 = vadd.f32 %v375, %v1279
    %v1285 = vxor.u32 %v1281, 2147483648
    %v1286 = vmul.f32 %v1285, 1.442695
    %v1287 = vpow.pop %v1286
    %v1288 = vadd.f32 %v1287, 1.0
    %v1289 = vrcp.pop %v1288
    %v1290 = vmul.f32 1.0, %v1289
    %v1291 = vxor.u32 %v1282, 2147483648
    %v1292 = vmul.f32 %v1291, 1.442695
    %v1293 = vpow.pop %v1292
    %v1294 = vadd.f32 %v1293, 1.0
    %v1295 = vrcp.pop %v1294
    %v1296 = vmul.f32 1.0, %v1295
    %v1297 = vtanh.pop %v1283
    %v1298 = vxor.u32 %v1284, 2147483648
    %v1299 = vmul.f32 %v1298, 1.442695
    %v1300 = vpow.pop %v1299
    %v1301 = vadd.f32 %v1300, 1.0
    %v1302 = vrcp.pop %v1301
    %v1303 = vmul.f32 1.0, %v1302
    %v1304 = vmul.f32 %v1296, %v1136
    %v1305 = vmul.f32 %v1290, %v1297
    %v1306 = vadd.f32 %v1304, %v1305
    %v1307 = vtanh.pop %v1306
    %v1308 = vmul.f32 %v1303, %v1307
    %1309 = vmatprep.subr.mxu0 %v456
    %1310 = vmatpush1.msra.mxu0 %v455
    %1311 = vmatprep.subr.mxu0 %v452
    %1312 = vmatpush1.msra.mxu0 %v451
    %1313 = vmatprep.subr.mxu0 %v448
    %1314 = vmatpush1.msra.mxu0 %v447
    %1315 = vmatprep.subr.mxu0 %v444
    %1316 = vmatpush1.msra.mxu0 %v443
    %1317 = vmatprep.subr.mxu0 %v440
    %1318 = vmatpush1.msra.mxu0 %v439
    %1319 = vmatprep.subr.mxu0 %v436
    %1320 = vmatpush1.msra.mxu0 %v435
    %1321 = vmatprep.subr.mxu0 %v432
    %1322 = vmatpush1.msra.mxu0 %v431
    %1323 = vmatprep.subr.mxu0 %v428
    %1324 = vmatpush1.msra.mxu0 %v427
    %1325 = vmatprep.subr.mxu0 %v424
    %1326 = vmatpush1.msra.mxu0 %v423
    %1327 = vmatprep.subr.mxu0 %v420
    %1328 = vmatpush1.msra.mxu0 %v419
    %1329 = vmatprep.subr.mxu0 %v416
    %1330 = vmatpush1.msra.mxu0 %v415
    %1331 = vmatprep.subr.mxu0 %v412
    %1332 = vmatpush1.msra.mxu0 %v411
    %1333 = vmatprep.subr.mxu0 %v408
    %1334 = vmatpush1.msra.mxu0 %v407
    %1335 = vmatprep.subr.mxu0 %v404
    %1336 = vmatpush1.msra.mxu0 %v403
    %1337 = vmatprep.subr.mxu0 %v400
    %1338 = vmatpush1.msra.mxu0 %v399
    %1339 = vmatprep.subr.mxu0 %v396
    %1340 = vmatpush1.msra.mxu0 %v395
    %1341 = vmatprep.subr.mxu0 0.0
    %1342 = vmatpush2.msra.mxu0 0.0
    %1343 = vmatprep.subr.mxu0 0.0
    %1344 = vmatpush2.msra.mxu0 0.0
    %1345 = vmatprep.subr.mxu0 0.0
    %1346 = vmatpush2.msra.mxu0 0.0
    %1347 = vmatprep.subr.mxu0 0.0
    %1348 = vmatpush2.msra.mxu0 0.0
    %1349 = vmatprep.subr.mxu0 0.0
    %1350 = vmatpush2.msra.mxu0 0.0
    %1351 = vmatprep.subr.mxu0 0.0
    %1352 = vmatpush2.msra.mxu0 0.0
    %1353 = vmatprep.subr.mxu0 0.0
    %1354 = vmatpush2.msra.mxu0 0.0
    %1355 = vmatprep.subr.mxu0 0.0
    %1356 = vmatpush2.msra.mxu0 0.0
    %1357 = vmatprep.subr.mxu0 0.0
    %1358 = vmatpush2.msra.mxu0 0.0
    %1359 = vmatprep.subr.mxu0 0.0
    %1360 = vmatpush2.msra.mxu0 0.0
    %1361 = vmatprep.subr.mxu0 0.0
    %1362 = vmatpush2.msra.mxu0 0.0
    %1363 = vmatprep.subr.mxu0 0.0
    %1364 = vmatpush2.msra.mxu0 0.0
    %1365 = vmatprep.subr.mxu0 0.0
    %1366 = vmatpush2.msra.mxu0 0.0
    %1367 = vmatprep.subr.mxu0 0.0
    %1368 = vmatpush2.msra.mxu0 0.0
    %1369 = vmatprep.subr.mxu0 0.0
    %1370 = vmatpush2.msra.mxu0 0.0
    %1371 = vmatprep.subr.mxu0 0.0
    %1372 = vmatpush2.msra.mxu0 0.0
    %1373 = vmatprep.mubr.f32.mxu0 0.0
    %1374 = vmatmul.mubr.f32.gmra.mxu0 %v1308
    %v1375 = vpop.f32.mrf.mxu0
    %v1376 = vadd.f32 0.0, %v1375
    %v1377 = vpop.f32.mrf.mxu0
    %v1378 = vadd.f32 0.0, %v1377
    %1379 = vdwg.mxu0
    %1380 = vmatprep.subr.mxu0 %v458
    %1381 = vmatpush1.msra.mxu0 %v457
    %1382 = vmatprep.subr.mxu0 %v454
    %1383 = vmatpush1.msra.mxu0 %v453
    %1384 = vmatprep.subr.mxu0 %v450
    %1385 = vmatpush1.msra.mxu0 %v449
    %1386 = vmatprep.subr.mxu0 %v446
    %1387 = vmatpush1.msra.mxu0 %v445
    %1388 = vmatprep.subr.mxu0 %v442
    %1389 = vmatpush1.msra.mxu0 %v441
    %1390 = vmatprep.subr.mxu0 %v438
    %1391 = vmatpush1.msra.mxu0 %v437
    %1392 = vmatprep.subr.mxu0 %v434
    %1393 = vmatpush1.msra.mxu0 %v433
    %1394 = vmatprep.subr.mxu0 %v430
    %1395 = vmatpush1.msra.mxu0 %v429
    %1396 = vmatprep.subr.mxu0 %v426
    %1397 = vmatpush1.msra.mxu0 %v425
    %1398 = vmatprep.subr.mxu0 %v422
    %1399 = vmatpush1.msra.mxu0 %v421
    %1400 = vmatprep.subr.mxu0 %v418
    %1401 = vmatpush1.msra.mxu0 %v417
    %1402 = vmatprep.subr.mxu0 %v414
    %1403 = vmatpush1.msra.mxu0 %v413
    %1404 = vmatprep.subr.mxu0 %v410
    %1405 = vmatpush1.msra.mxu0 %v409
    %1406 = vmatprep.subr.mxu0 %v406
    %1407 = vmatpush1.msra.mxu0 %v405
    %1408 = vmatprep.subr.mxu0 %v402
    %1409 = vmatpush1.msra.mxu0 %v401
    %1410 = vmatprep.subr.mxu0 %v398
    %1411 = vmatpush1.msra.mxu0 %v397
    %1412 = vmatprep.subr.mxu0 0.0
    %1413 = vmatpush2.msra.mxu0 0.0
    %1414 = vmatprep.subr.mxu0 0.0
    %1415 = vmatpush2.msra.mxu0 0.0
    %1416 = vmatprep.subr.mxu0 0.0
    %1417 = vmatpush2.msra.mxu0 0.0
    %1418 = vmatprep.subr.mxu0 0.0
    %1419 = vmatpush2.msra.mxu0 0.0
    %1420 = vmatprep.subr.mxu0 0.0
    %1421 = vmatpush2.msra.mxu0 0.0
    %1422 = vmatprep.subr.mxu0 0.0
    %1423 = vmatpush2.msra.mxu0 0.0
    %1424 = vmatprep.subr.mxu0 0.0
    %1425 = vmatpush2.msra.mxu0 0.0
    %1426 = vmatprep.subr.mxu0 0.0
    %1427 = vmatpush2.msra.mxu0 0.0
    %1428 = vmatprep.subr.mxu0 0.0
    %1429 = vmatpush2.msra.mxu0 0.0
    %1430 = vmatprep.subr.mxu0 0.0
    %1431 = vmatpush2.msra.mxu0 0.0
    %1432 = vmatprep.subr.mxu0 0.0
    %1433 = vmatpush2.msra.mxu0 0.0
    %1434 = vmatprep.subr.mxu0 0.0
    %1435 = vmatpush2.msra.mxu0 0.0
    %1436 = vmatprep.subr.mxu0 0.0
    %1437 = vmatpush2.msra.mxu0 0.0
    %1438 = vmatprep.subr.mxu0 0.0
    %1439 = vmatpush2.msra.mxu0 0.0
    %1440 = vmatprep.subr.mxu0 0.0
    %1441 = vmatpush2.msra.mxu0 0.0
    %1442 = vmatprep.subr.mxu0 0.0
    %1443 = vmatpush2.msra.mxu0 0.0
    %1444 = vmatprep.mubr.f32.mxu0 0.0
    %1445 = vmatmul.mubr.f32.gmra.mxu0 %v1308
    %v1446 = vpop.f32.mrf.mxu0
    %v1447 = vadd.f32 0.0, %v1446
    %v1448 = vpop.f32.mrf.mxu0
    %v1449 = vadd.f32 0.0, %v1448
    %1450 = vdwg.mxu0
    %v1451 = vadd.f32 %v266, %v1376
    %v1452 = vadd.f32 %v268, %v1378
    %v1453 = vadd.f32 %v379, %v1447
    %v1454 = vadd.f32 %v381, %v1449
    %v1455 = vxor.u32 %v1451, 2147483648
    %v1456 = vmul.f32 %v1455, 1.442695
    %v1457 = vpow.pop %v1456
    %v1458 = vadd.f32 %v1457, 1.0
    %v1459 = vrcp.pop %v1458
    %v1460 = vmul.f32 1.0, %v1459
    %v1461 = vxor.u32 %v1452, 2147483648
    %v1462 = vmul.f32 %v1461, 1.442695
    %v1463 = vpow.pop %v1462
    %v1464 = vadd.f32 %v1463, 1.0
    %v1465 = vrcp.pop %v1464
    %v1466 = vmul.f32 1.0, %v1465
    %v1467 = vtanh.pop %v1453
    %v1468 = vxor.u32 %v1454, 2147483648
    %v1469 = vmul.f32 %v1468, 1.442695
    %v1470 = vpow.pop %v1469
    %v1471 = vadd.f32 %v1470, 1.0
    %v1472 = vrcp.pop %v1471
    %v1473 = vmul.f32 1.0, %v1472
    %v1474 = vmul.f32 %v1466, %v1306
    %v1475 = vmul.f32 %v1460, %v1467
    %v1476 = vadd.f32 %v1474, %v1475
    %v1477 = vtanh.pop %v1476
    %v1478 = vmul.f32 %v1473, %v1477
    %1479 = vmatprep.subr.mxu0 %v456
    %1480 = vmatpush1.msra.mxu0 %v455
    %1481 = vmatprep.subr.mxu0 %v452
    %1482 = vmatpush1.msra.mxu0 %v451
    %1483 = vmatprep.subr.mxu0 %v448
    %1484 = vmatpush1.msra.mxu0 %v447
    %1485 = vmatprep.subr.mxu0 %v444
    %1486 = vmatpush1.msra.mxu0 %v443
    %1487 = vmatprep.subr.mxu0 %v440
    %1488 = vmatpush1.msra.mxu0 %v439
    %1489 = vmatprep.subr.mxu0 %v436
    %1490 = vmatpush1.msra.mxu0 %v435
    %1491 = vmatprep.subr.mxu0 %v432
    %1492 = vmatpush1.msra.mxu0 %v431
    %1493 = vmatprep.subr.mxu0 %v428
    %1494 = vmatpush1.msra.mxu0 %v427
    %1495 = vmatprep.subr.mxu0 %v424
    %1496 = vmatpush1.msra.mxu0 %v423
    %1497 = vmatprep.subr.mxu0 %v420
    %1498 = vmatpush1.msra.mxu0 %v419
    %1499 = vmatprep.subr.mxu0 %v416
    %1500 = vmatpush1.msra.mxu0 %v415
    %1501 = vmatprep.subr.mxu0 %v412
    %1502 = vmatpush1.msra.mxu0 %v411
    %1503 = vmatprep.subr.mxu0 %v408
    %1504 = vmatpush1.msra.mxu0 %v407
    %1505 = vmatprep.subr.mxu0 %v404
    %1506 = vmatpush1.msra.mxu0 %v403
    %1507 = vmatprep.subr.mxu0 %v400
    %1508 = vmatpush1.msra.mxu0 %v399
    %1509 = vmatprep.subr.mxu0 %v396
    %1510 = vmatpush1.msra.mxu0 %v395
    %1511 = vmatprep.subr.mxu0 0.0
    %1512 = vmatpush2.msra.mxu0 0.0
    %1513 = vmatprep.subr.mxu0 0.0
    %1514 = vmatpush2.msra.mxu0 0.0
    %1515 = vmatprep.subr.mxu0 0.0
    %1516 = vmatpush2.msra.mxu0 0.0
    %1517 = vmatprep.subr.mxu0 0.0
    %1518 = vmatpush2.msra.mxu0 0.0
    %1519 = vmatprep.subr.mxu0 0.0
    %1520 = vmatpush2.msra.mxu0 0.0
    %1521 = vmatprep.subr.mxu0 0.0
    %1522 = vmatpush2.msra.mxu0 0.0
    %1523 = vmatprep.subr.mxu0 0.0
    %1524 = vmatpush2.msra.mxu0 0.0
    %1525 = vmatprep.subr.mxu0 0.0
    %1526 = vmatpush2.msra.mxu0 0.0
    %1527 = vmatprep.subr.mxu0 0.0
    %1528 = vmatpush2.msra.mxu0 0.0
    %1529 = vmatprep.subr.mxu0 0.0
    %1530 = vmatpush2.msra.mxu0 0.0
    %1531 = vmatprep.subr.mxu0 0.0
    %1532 = vmatpush2.msra.mxu0 0.0
    %1533 = vmatprep.subr.mxu0 0.0
    %1534 = vmatpush2.msra.mxu0 0.0
    %1535 = vmatprep.subr.mxu0 0.0
    %1536 = vmatpush2.msra.mxu0 0.0
    %1537 = vmatprep.subr.mxu0 0.0
    %1538 = vmatpush2.msra.mxu0 0.0
    %1539 = vmatprep.subr.mxu0 0.0
    %1540 = vmatpush2.msra.mxu0 0.0
    %1541 = vmatprep.subr.mxu0 0.0
    %1542 = vmatpush2.msra.mxu0 0.0
    %1543 = vmatprep.mubr.f32.mxu0 0.0
    %1544 = vmatmul.mubr.f32.gmra.mxu0 %v1478
    %v1545 = vpop.f32.mrf.mxu0
    %v1546 = vadd.f32 0.0, %v1545
    %v1547 = vpop.f32.mrf.mxu0
    %v1548 = vadd.f32 0.0, %v1547
    %1549 = vdwg.mxu0
    %1550 = vmatprep.subr.mxu0 %v458
    %1551 = vmatpush1.msra.mxu0 %v457
    %1552 = vmatprep.subr.mxu0 %v454
    %1553 = vmatpush1.msra.mxu0 %v453
    %1554 = vmatprep.subr.mxu0 %v450
    %1555 = vmatpush1.msra.mxu0 %v449
    %1556 = vmatprep.subr.mxu0 %v446
    %1557 = vmatpush1.msra.mxu0 %v445
    %1558 = vmatprep.subr.mxu0 %v442
    %1559 = vmatpush1.msra.mxu0 %v441
    %1560 = vmatprep.subr.mxu0 %v438
    %1561 = vmatpush1.msra.mxu0 %v437
    %1562 = vmatprep.subr.mxu0 %v434
    %1563 = vmatpush1.msra.mxu0 %v433
    %1564 = vmatprep.subr.mxu0 %v430
    %1565 = vmatpush1.msra.mxu0 %v429
    %1566 = vmatprep.subr.mxu0 %v426
    %1567 = vmatpush1.msra.mxu0 %v425
    %1568 = vmatprep.subr.mxu0 %v422
    %1569 = vmatpush1.msra.mxu0 %v421
    %1570 = vmatprep.subr.mxu0 %v418
    %1571 = vmatpush1.msra.mxu0 %v417
    %1572 = vmatprep.subr.mxu0 %v414
    %1573 = vmatpush1.msra.mxu0 %v413
    %1574 = vmatprep.subr.mxu0 %v410
    %1575 = vmatpush1.msra.mxu0 %v409
    %1576 = vmatprep.subr.mxu0 %v406
    %1577 = vmatpush1.msra.mxu0 %v405
    %1578 = vmatprep.subr.mxu0 %v402
    %1579 = vmatpush1.msra.mxu0 %v401
    %1580 = vmatprep.subr.mxu0 %v398
    %1581 = vmatpush1.msra.mxu0 %v397
    %1582 = vmatprep.subr.mxu0 0.0
    %1583 = vmatpush2.msra.mxu0 0.0
    %1584 = vmatprep.subr.mxu0 0.0
    %1585 = vmatpush2.msra.mxu0 0.0
    %1586 = vmatprep.subr.mxu0 0.0
    %1587 = vmatpush2.msra.mxu0 0.0
    %1588 = vmatprep.subr.mxu0 0.0
    %1589 = vmatpush2.msra.mxu0 0.0
    %1590 = vmatprep.subr.mxu0 0.0
    %1591 = vmatpush2.msra.mxu0 0.0
    %1592 = vmatprep.subr.mxu0 0.0
    %1593 = vmatpush2.msra.mxu0 0.0
    %1594 = vmatprep.subr.mxu0 0.0
    %1595 = vmatpush2.msra.mxu0 0.0
    %1596 = vmatprep.subr.mxu0 0.0
    %1597 = vmatpush2.msra.mxu0 0.0
    %1598 = vmatprep.subr.mxu0 0.0
    %1599 = vmatpush2.msra.mxu0 0.0
    %1600 = vmatprep.subr.mxu0 0.0
    %1601 = vmatpush2.msra.mxu0 0.0
    %1602 = vmatprep.subr.mxu0 0.0
    %1603 = vmatpush2.msra.mxu0 0.0
    %1604 = vmatprep.subr.mxu0 0.0
    %1605 = vmatpush2.msra.mxu0 0.0
    %1606 = vmatprep.subr.mxu0 0.0
    %1607 = vmatpush2.msra.mxu0 0.0
    %1608 = vmatprep.subr.mxu0 0.0
    %1609 = vmatpush2.msra.mxu0 0.0
    %1610 = vmatprep.subr.mxu0 0.0
    %1611 = vmatpush2.msra.mxu0 0.0
    %1612 = vmatprep.subr.mxu0 0.0
    %1613 = vmatpush2.msra.mxu0 0.0
    %1614 = vmatprep.mubr.f32.mxu0 0.0
    %1615 = vmatmul.mubr.f32.gmra.mxu0 %v1478
    %v1616 = vpop.f32.mrf.mxu0
    %v1617 = vadd.f32 0.0, %v1616
    %v1618 = vpop.f32.mrf.mxu0
    %v1619 = vadd.f32 0.0, %v1618
    %1620 = vdwg.mxu0
    %v1621 = vadd.f32 %v272, %v1546
    %v1622 = vadd.f32 %v274, %v1548
    %v1623 = vadd.f32 %v385, %v1617
    %v1624 = vadd.f32 %v387, %v1619
    %v1625 = vxor.u32 %v1621, 2147483648
    %v1626 = vmul.f32 %v1625, 1.442695
    %v1627 = vpow.pop %v1626
    %v1628 = vadd.f32 %v1627, 1.0
    %v1629 = vrcp.pop %v1628
    %v1630 = vmul.f32 1.0, %v1629
    %v1631 = vxor.u32 %v1622, 2147483648
    %v1632 = vmul.f32 %v1631, 1.442695
    %v1633 = vpow.pop %v1632
    %v1634 = vadd.f32 %v1633, 1.0
    %v1635 = vrcp.pop %v1634
    %v1636 = vmul.f32 1.0, %v1635
    %v1637 = vtanh.pop %v1623
    %v1638 = vxor.u32 %v1624, 2147483648
    %v1639 = vmul.f32 %v1638, 1.442695
    %v1640 = vpow.pop %v1639
    %v1641 = vadd.f32 %v1640, 1.0
    %v1642 = vrcp.pop %v1641
    %v1643 = vmul.f32 1.0, %v1642
    %v1644 = vmul.f32 %v1636, %v1476
    %v1645 = vmul.f32 %v1630, %v1637
    %v1646 = vadd.f32 %v1644, %v1645
    %v1647 = vtanh.pop %v1646
    %v1648 = vmul.f32 %v1643, %v1647
    %1649 = vmatprep.subr.mxu0 %v456
    %1650 = vmatpush1.msra.mxu0 %v455
    %1651 = vmatprep.subr.mxu0 %v452
    %1652 = vmatpush1.msra.mxu0 %v451
    %1653 = vmatprep.subr.mxu0 %v448
    %1654 = vmatpush1.msra.mxu0 %v447
    %1655 = vmatprep.subr.mxu0 %v444
    %1656 = vmatpush1.msra.mxu0 %v443
    %1657 = vmatprep.subr.mxu0 %v440
    %1658 = vmatpush1.msra.mxu0 %v439
    %1659 = vmatprep.subr.mxu0 %v436
    %1660 = vmatpush1.msra.mxu0 %v435
    %1661 = vmatprep.subr.mxu0 %v432
    %1662 = vmatpush1.msra.mxu0 %v431
    %1663 = vmatprep.subr.mxu0 %v428
    %1664 = vmatpush1.msra.mxu0 %v427
    %1665 = vmatprep.subr.mxu0 %v424
    %1666 = vmatpush1.msra.mxu0 %v423
    %1667 = vmatprep.subr.mxu0 %v420
    %1668 = vmatpush1.msra.mxu0 %v419
    %1669 = vmatprep.subr.mxu0 %v416
    %1670 = vmatpush1.msra.mxu0 %v415
    %1671 = vmatprep.subr.mxu0 %v412
    %1672 = vmatpush1.msra.mxu0 %v411
    %1673 = vmatprep.subr.mxu0 %v408
    %1674 = vmatpush1.msra.mxu0 %v407
    %1675 = vmatprep.subr.mxu0 %v404
    %1676 = vmatpush1.msra.mxu0 %v403
    %1677 = vmatprep.subr.mxu0 %v400
    %1678 = vmatpush1.msra.mxu0 %v399
    %1679 = vmatprep.subr.mxu0 %v396
    %1680 = vmatpush1.msra.mxu0 %v395
    %1681 = vmatprep.subr.mxu0 0.0
    %1682 = vmatpush2.msra.mxu0 0.0
    %1683 = vmatprep.subr.mxu0 0.0
    %1684 = vmatpush2.msra.mxu0 0.0
    %1685 = vmatprep.subr.mxu0 0.0
    %1686 = vmatpush2.msra.mxu0 0.0
    %1687 = vmatprep.subr.mxu0 0.0
    %1688 = vmatpush2.msra.mxu0 0.0
    %1689 = vmatprep.subr.mxu0 0.0
    %1690 = vmatpush2.msra.mxu0 0.0
    %1691 = vmatprep.subr.mxu0 0.0
    %1692 = vmatpush2.msra.mxu0 0.0
    %1693 = vmatprep.subr.mxu0 0.0
    %1694 = vmatpush2.msra.mxu0 0.0
    %1695 = vmatprep.subr.mxu0 0.0
    %1696 = vmatpush2.msra.mxu0 0.0
    %1697 = vmatprep.subr.mxu0 0.0
    %1698 = vmatpush2.msra.mxu0 0.0
    %1699 = vmatprep.subr.mxu0 0.0
    %1700 = vmatpush2.msra.mxu0 0.0
    %1701 = vmatprep.subr.mxu0 0.0
    %1702 = vmatpush2.msra.mxu0 0.0
    %1703 = vmatprep.subr.mxu0 0.0
    %1704 = vmatpush2.msra.mxu0 0.0
    %1705 = vmatprep.subr.mxu0 0.0
    %1706 = vmatpush2.msra.mxu0 0.0
    %1707 = vmatprep.subr.mxu0 0.0
    %1708 = vmatpush2.msra.mxu0 0.0
    %1709 = vmatprep.subr.mxu0 0.0
    %1710 = vmatpush2.msra.mxu0 0.0
    %1711 = vmatprep.subr.mxu0 0.0
    %1712 = vmatpush2.msra.mxu0 0.0
    %1713 = vmatprep.mubr.f32.mxu0 0.0
    %1714 = vmatmul.mubr.f32.gmra.mxu0 %v1648
    %v1715 = vpop.f32.mrf.mxu0
    %v1716 = vadd.f32 0.0, %v1715
    %v1717 = vpop.f32.mrf.mxu0
    %v1718 = vadd.f32 0.0, %v1717
    %1719 = vdwg.mxu0
    %1720 = vmatprep.subr.mxu0 %v458
    %1721 = vmatpush1.msra.mxu0 %v457
    %1722 = vmatprep.subr.mxu0 %v454
    %1723 = vmatpush1.msra.mxu0 %v453
    %1724 = vmatprep.subr.mxu0 %v450
    %1725 = vmatpush1.msra.mxu0 %v449
    %1726 = vmatprep.subr.mxu0 %v446
    %1727 = vmatpush1.msra.mxu0 %v445
    %1728 = vmatprep.subr.mxu0 %v442
    %1729 = vmatpush1.msra.mxu0 %v441
    %1730 = vmatprep.subr.mxu0 %v438
    %1731 = vmatpush1.msra.mxu0 %v437
    %1732 = vmatprep.subr.mxu0 %v434
    %1733 = vmatpush1.msra.mxu0 %v433
    %1734 = vmatprep.subr.mxu0 %v430
    %1735 = vmatpush1.msra.mxu0 %v429
    %1736 = vmatprep.subr.mxu0 %v426
    %1737 = vmatpush1.msra.mxu0 %v425
    %1738 = vmatprep.subr.mxu0 %v422
    %1739 = vmatpush1.msra.mxu0 %v421
    %1740 = vmatprep.subr.mxu0 %v418
    %1741 = vmatpush1.msra.mxu0 %v417
    %1742 = vmatprep.subr.mxu0 %v414
    %1743 = vmatpush1.msra.mxu0 %v413
    %1744 = vmatprep.subr.mxu0 %v410
    %1745 = vmatpush1.msra.mxu0 %v409
    %1746 = vmatprep.subr.mxu0 %v406
    %1747 = vmatpush1.msra.mxu0 %v405
    %1748 = vmatprep.subr.mxu0 %v402
    %1749 = vmatpush1.msra.mxu0 %v401
    %1750 = vmatprep.subr.mxu0 %v398
    %1751 = vmatpush1.msra.mxu0 %v397
    %1752 = vmatprep.subr.mxu0 0.0
    %1753 = vmatpush2.msra.mxu0 0.0
    %1754 = vmatprep.subr.mxu0 0.0
    %1755 = vmatpush2.msra.mxu0 0.0
    %1756 = vmatprep.subr.mxu0 0.0
    %1757 = vmatpush2.msra.mxu0 0.0
    %1758 = vmatprep.subr.mxu0 0.0
    %1759 = vmatpush2.msra.mxu0 0.0
    %1760 = vmatprep.subr.mxu0 0.0
    %1761 = vmatpush2.msra.mxu0 0.0
    %1762 = vmatprep.subr.mxu0 0.0
    %1763 = vmatpush2.msra.mxu0 0.0
    %1764 = vmatprep.subr.mxu0 0.0
    %1765 = vmatpush2.msra.mxu0 0.0
    %1766 = vmatprep.subr.mxu0 0.0
    %1767 = vmatpush2.msra.mxu0 0.0
    %1768 = vmatprep.subr.mxu0 0.0
    %1769 = vmatpush2.msra.mxu0 0.0
    %1770 = vmatprep.subr.mxu0 0.0
    %1771 = vmatpush2.msra.mxu0 0.0
    %1772 = vmatprep.subr.mxu0 0.0
    %1773 = vmatpush2.msra.mxu0 0.0
    %1774 = vmatprep.subr.mxu0 0.0
    %1775 = vmatpush2.msra.mxu0 0.0
    %1776 = vmatprep.subr.mxu0 0.0
    %1777 = vmatpush2.msra.mxu0 0.0
    %1778 = vmatprep.subr.mxu0 0.0
    %1779 = vmatpush2.msra.mxu0 0.0
    %1780 = vmatprep.subr.mxu0 0.0
    %1781 = vmatpush2.msra.mxu0 0.0
    %1782 = vmatprep.subr.mxu0 0.0
    %1783 = vmatpush2.msra.mxu0 0.0
    %1784 = vmatprep.mubr.f32.mxu0 0.0
    %1785 = vmatmul.mubr.f32.gmra.mxu0 %v1648
    %v1786 = vpop.f32.mrf.mxu0
    %v1787 = vadd.f32 0.0, %v1786
    %v1788 = vpop.f32.mrf.mxu0
    %v1789 = vadd.f32 0.0, %v1788
    %1790 = vdwg.mxu0
    %v1791 = vadd.f32 %v278, %v1716
    %v1792 = vadd.f32 %v280, %v1718
    %v1793 = vadd.f32 %v391, %v1787
    %v1794 = vadd.f32 %v393, %v1789
    %v1795 = vxor.u32 %v1791, 2147483648
    %v1796 = vmul.f32 %v1795, 1.442695
    %v1797 = vpow.pop %v1796
    %v1798 = vadd.f32 %v1797, 1.0
    %v1799 = vrcp.pop %v1798
    %v1800 = vmul.f32 1.0, %v1799
    %v1801 = vxor.u32 %v1792, 2147483648
    %v1802 = vmul.f32 %v1801, 1.442695
    %v1803 = vpow.pop %v1802
    %v1804 = vadd.f32 %v1803, 1.0
    %v1805 = vrcp.pop %v1804
    %v1806 = vmul.f32 1.0, %v1805
    %v1807 = vtanh.pop %v1793
    %v1808 = vxor.u32 %v1794, 2147483648
    %v1809 = vmul.f32 %v1808, 1.442695
    %v1810 = vpow.pop %v1809
    %v1811 = vadd.f32 %v1810, 1.0
    %v1812 = vrcp.pop %v1811
    %v1813 = vmul.f32 1.0, %v1812
    %v1814 = vmul.f32 %v1806, %v1646
    %v1815 = vmul.f32 %v1800, %v1807
    %v1816 = vadd.f32 %v1814, %v1815
    %v1817 = vtanh.pop %v1816
    %v1818 = vmul.f32 %v1813, %v1817
    %v1819 = vld [vmem:[#allocation7] sm:$0xff]
    %v1820 = vld [vmem:[#allocation7 + $0x8] sm:$0xff]
    %v1821 = vld [vmem:[#allocation7 + $0x10] sm:$0xff]
    %v1822 = vld [vmem:[#allocation7 + $0x18] sm:$0xff]
    %v1823 = vld [vmem:[#allocation7 + $0x20] sm:$0xff]
    %v1824 = vld [vmem:[#allocation7 + $0x28] sm:$0xff]
    %v1825 = vld [vmem:[#allocation7 + $0x30] sm:$0xff]
    %v1826 = vld [vmem:[#allocation7 + $0x38] sm:$0xff]
    %v1827 = vld [vmem:[#allocation7 + $0x40] sm:$0xff]
    %v1828 = vld [vmem:[#allocation7 + $0x48] sm:$0xff]
    %v1829 = vld [vmem:[#allocation7 + $0x50] sm:$0xff]
    %v1830 = vld [vmem:[#allocation7 + $0x58] sm:$0xff]
    %v1831 = vld [vmem:[#allocation7 + $0x60] sm:$0xff]
    %v1832 = vld [vmem:[#allocation7 + $0x68] sm:$0xff]
    %v1833 = vld [vmem:[#allocation7 + $0x70] sm:$0xff]
    %v1834 = vld [vmem:[#allocation7 + $0x78] sm:$0xff]
    %v1835 = vld [vmem:[%s5] sm:$0x1]
    %v1837 = vlaneseq
    %v1838 = vshrl.u32 %v1837, 7
    %v1839 = vsub.s32 0, %v1838
    %v1840 = vrot.slane %v1835, %v1839
    %1842 = vmatprep.subr.mxu0 0.0
    %1843 = vmatpush1.msra.mxu0 %v1834
    %1844 = vmatprep.subr.mxu0 0.0
    %1845 = vmatpush1.msra.mxu0 %v1833
    %1846 = vmatprep.subr.mxu0 0.0
    %1847 = vmatpush1.msra.mxu0 %v1832
    %1848 = vmatprep.subr.mxu0 0.0
    %1849 = vmatpush1.msra.mxu0 %v1831
    %1850 = vmatprep.subr.mxu0 0.0
    %1851 = vmatpush1.msra.mxu0 %v1830
    %1852 = vmatprep.subr.mxu0 0.0
    %1853 = vmatpush1.msra.mxu0 %v1829
    %1854 = vmatprep.subr.mxu0 0.0
    %1855 = vmatpush1.msra.mxu0 %v1828
    %1856 = vmatprep.subr.mxu0 0.0
    %1857 = vmatpush1.msra.mxu0 %v1827
    %1858 = vmatprep.subr.mxu0 0.0
    %1859 = vmatpush1.msra.mxu0 %v1826
    %1860 = vmatprep.subr.mxu0 0.0
    %1861 = vmatpush1.msra.mxu0 %v1825
    %1862 = vmatprep.subr.mxu0 0.0
    %1863 = vmatpush1.msra.mxu0 %v1824
    %1864 = vmatprep.subr.mxu0 0.0
    %1865 = vmatpush1.msra.mxu0 %v1823
    %1866 = vmatprep.subr.mxu0 0.0
    %1867 = vmatpush1.msra.mxu0 %v1822
    %1868 = vmatprep.subr.mxu0 0.0
    %1869 = vmatpush1.msra.mxu0 %v1821
    %1870 = vmatprep.subr.mxu0 0.0
    %1871 = vmatpush1.msra.mxu0 %v1820
    %1872 = vmatprep.subr.mxu0 0.0
    %1873 = vmatpush1.msra.mxu0 %v1819
    %1874 = vmatprep.subr.mxu0 0.0
    %1875 = vmatpush2.msra.mxu0 0.0
    %1876 = vmatprep.subr.mxu0 0.0
    %1877 = vmatpush2.msra.mxu0 0.0
    %1878 = vmatprep.subr.mxu0 0.0
    %1879 = vmatpush2.msra.mxu0 0.0
    %1880 = vmatprep.subr.mxu0 0.0
    %1881 = vmatpush2.msra.mxu0 0.0
    %1882 = vmatprep.subr.mxu0 0.0
    %1883 = vmatpush2.msra.mxu0 0.0
    %1884 = vmatprep.subr.mxu0 0.0
    %1885 = vmatpush2.msra.mxu0 0.0
    %1886 = vmatprep.subr.mxu0 0.0
    %1887 = vmatpush2.msra.mxu0 0.0
    %1888 = vmatprep.subr.mxu0 0.0
    %1889 = vmatpush2.msra.mxu0 0.0
    %1890 = vmatprep.subr.mxu0 0.0
    %1891 = vmatpush2.msra.mxu0 0.0
    %1892 = vmatprep.subr.mxu0 0.0
    %1893 = vmatpush2.msra.mxu0 0.0
    %1894 = vmatprep.subr.mxu0 0.0
    %1895 = vmatpush2.msra.mxu0 0.0
    %1896 = vmatprep.subr.mxu0 0.0
    %1897 = vmatpush2.msra.mxu0 0.0
    %1898 = vmatprep.subr.mxu0 0.0
    %1899 = vmatpush2.msra.mxu0 0.0
    %1900 = vmatprep.subr.mxu0 0.0
    %1901 = vmatpush2.msra.mxu0 0.0
    %1902 = vmatprep.subr.mxu0 0.0
    %1903 = vmatpush2.msra.mxu0 0.0
    %1904 = vmatprep.subr.mxu0 0.0
    %1905 = vmatpush2.msra.mxu0 0.0
    %1906 = vmatprep.mubr.f32.mxu0 0.0
    %1907 = vmatmul.mubr.f32.gmra.mxu0 %v1818
    %v1908 = vpop.f32.mrf.mxu0
    %v1909 = vadd.f32 %v1840, %v1908
    %v1910 = vpop.f32.mrf.mxu0
    %1911 = vdwg.mxu0
    %v1912 = vmax.f32 %v1909, 0.0
    %v1913 = vld [vmem:[#allocation8] sm:$0xff]
    %v1914 = vld [vmem:[#allocation8 + $0x8] sm:$0xff]
    %v1915 = vld [vmem:[#allocation8 + $0x10] sm:$0xff]
    %v1916 = vld [vmem:[#allocation8 + $0x18] sm:$0xff]
    %v1917 = vld [vmem:[#allocation8 + $0x20] sm:$0xff]
    %v1918 = vld [vmem:[#allocation8 + $0x28] sm:$0xff]
    %v1919 = vld [vmem:[#allocation8 + $0x30] sm:$0xff]
    %v1920 = vld [vmem:[#allocation8 + $0x38] sm:$0xff]
    %v1921 = vld [vmem:[#allocation8 + $0x40] sm:$0xff]
    %v1922 = vld [vmem:[#allocation8 + $0x48] sm:$0xff]
    %v1923 = vld [vmem:[#allocation8 + $0x50] sm:$0xff]
    %v1924 = vld [vmem:[#allocation8 + $0x58] sm:$0xff]
    %v1925 = vld [vmem:[#allocation8 + $0x60] sm:$0xff]
    %v1926 = vld [vmem:[#allocation8 + $0x68] sm:$0xff]
    %v1927 = vld [vmem:[#allocation8 + $0x70] sm:$0xff]
    %v1928 = vld [vmem:[#allocation8 + $0x78] sm:$0xff]
    %v1929 = vld [vmem:[%s7] sm:$0x1]
    %v1931 = vlaneseq
    %v1932 = vshrl.u32 %v1931, 7
    %v1933 = vsub.s32 0, %v1932
    %v1934 = vrot.slane %v1929, %v1933
    %1936 = vmatprep.subr.mxu0 0.0
    %1937 = vmatpush1.msra.mxu0 %v1928
    %1938 = vmatprep.subr.mxu0 0.0
    %1939 = vmatpush1.msra.mxu0 %v1927
    %1940 = vmatprep.subr.mxu0 0.0
    %1941 = vmatpush1.msra.mxu0 %v1926
    %1942 = vmatprep.subr.mxu0 0.0
    %1943 = vmatpush1.msra.mxu0 %v1925
    %1944 = vmatprep.subr.mxu0 0.0
    %1945 = vmatpush1.msra.mxu0 %v1924
    %1946 = vmatprep.subr.mxu0 0.0
    %1947 = vmatpush1.msra.mxu0 %v1923
    %1948 = vmatprep.subr.mxu0 0.0
    %1949 = vmatpush1.msra.mxu0 %v1922
    %1950 = vmatprep.subr.mxu0 0.0
    %1951 = vmatpush1.msra.mxu0 %v1921
    %1952 = vmatprep.subr.mxu0 0.0
    %1953 = vmatpush1.msra.mxu0 %v1920
    %1954 = vmatprep.subr.mxu0 0.0
    %1955 = vmatpush1.msra.mxu0 %v1919
    %1956 = vmatprep.subr.mxu0 0.0
    %1957 = vmatpush1.msra.mxu0 %v1918
    %1958 = vmatprep.subr.mxu0 0.0
    %1959 = vmatpush1.msra.mxu0 %v1917
    %1960 = vmatprep.subr.mxu0 0.0
    %1961 = vmatpush1.msra.mxu0 %v1916
    %1962 = vmatprep.subr.mxu0 0.0
    %1963 = vmatpush1.msra.mxu0 %v1915
    %1964 = vmatprep.subr.mxu0 0.0
    %1965 = vmatpush1.msra.mxu0 %v1914
    %1966 = vmatprep.subr.mxu0 0.0
    %1967 = vmatpush1.msra.mxu0 %v1913
    %1968 = vmatprep.subr.mxu0 0.0
    %1969 = vmatpush2.msra.mxu0 0.0
    %1970 = vmatprep.subr.mxu0 0.0
    %1971 = vmatpush2.msra.mxu0 0.0
    %1972 = vmatprep.subr.mxu0 0.0
    %1973 = vmatpush2.msra.mxu0 0.0
    %1974 = vmatprep.subr.mxu0 0.0
    %1975 = vmatpush2.msra.mxu0 0.0
    %1976 = vmatprep.subr.mxu0 0.0
    %1977 = vmatpush2.msra.mxu0 0.0
    %1978 = vmatprep.subr.mxu0 0.0
    %1979 = vmatpush2.msra.mxu0 0.0
    %1980 = vmatprep.subr.mxu0 0.0
    %1981 = vmatpush2.msra.mxu0 0.0
    %1982 = vmatprep.subr.mxu0 0.0
    %1983 = vmatpush2.msra.mxu0 0.0
    %1984 = vmatprep.subr.mxu0 0.0
    %1985 = vmatpush2.msra.mxu0 0.0
    %1986 = vmatprep.subr.mxu0 0.0
    %1987 = vmatpush2.msra.mxu0 0.0
    %1988 = vmatprep.subr.mxu0 0.0
    %1989 = vmatpush2.msra.mxu0 0.0
    %1990 = vmatprep.subr.mxu0 0.0
    %1991 = vmatpush2.msra.mxu0 0.0
    %1992 = vmatprep.subr.mxu0 0.0
    %1993 = vmatpush2.msra.mxu0 0.0
    %1994 = vmatprep.subr.mxu0 0.0
    %1995 = vmatpush2.msra.mxu0 0.0
    %1996 = vmatprep.subr.mxu0 0.0
    %1997 = vmatpush2.msra.mxu0 0.0
    %1998 = vmatprep.subr.mxu0 0.0
    %1999 = vmatpush2.msra.mxu0 0.0
    %2000 = vmatprep.mubr.f32.mxu0 0.0
    %2001 = vmatmul.mubr.f32.gmra.mxu0 %v1912
    %v2002 = vpop.f32.mrf.mxu0
    %v2003 = vadd.f32 %v1934, %v2002
    %v2004 = vpop.f32.mrf.mxu0
    %2005 = vdwg.mxu0
    %v2006 = vmax.f32 %v2003, 0.0
    %2007 = vst [vmem:[#allocation10] sm:$0xff] %v2006
    // Predicated region
    $region50: #{tpu_custom_call.1} parent=1 // pred_check
      _
    $region51: #{tpu_custom_call.1} parent=1 // pred_check_branch
      %2009 = sbr.rel (0) target = $region53
    $region52: #{tpu_custom_call.1} parent=1 // pred_region
      %s2011 = ssub.s32 128, 128
      %2012 = vsyncadd [#allocation4], %s2011
      %s2014 = sshll.u32 [#allocation10], 4
      %s2015 = int_to_ptr.vmem [resolvable:$true] %s2014
      %2017 = dma.vmem_to_hbm [thread:$0]  %s2015, 128, %s8, [#allocation4]
    $region53: #{tpu_custom_call.1} parent=1 // pred_fallthru
      _
    // Predicated region
    $region54: #{tpu_custom_call.1} parent=1 // pred_check
      _
    $region55: #{tpu_custom_call.1} parent=1 // pred_check_branch
      %2019 = sbr.rel (0) target = $region57
    $region56: #{tpu_custom_call.1} parent=1 // pred_region
      %2020 = dma.done [#allocation4], 128
    $region57: #{tpu_custom_call.1} parent=1 // pred_fallthru
      _
    %2021 = vsyncpa [#allocation3], 1
    %2022 = vsyncpa [#allocation6], 1
    %2023 = vsyncpa [#allocation9], 1
    %2024 = vsyncpa [#allocation4], 1

</llo_original>
